<compile_context>
chip_gen: v7x
topology: tpu7x:2x2x1
jax: 0.10.0
libtpu: 0.0.40
codegen_flags: <defaults>
</compile_context>

<pallas_src>
import math
import jax
import jax.numpy as jnp
from jax.experimental import pallas as pl
from jax.experimental.pallas import tpu as pltpu

# ----------------------------- model hyper-params ---------------------------
EMB_DIM = 32      # d_model
HID_DIM = 64      # feed-forward hidden dim
N_HEADS = 4
N_LAYERS = 2
VOCAB = 64
SEQ = 8
BATCH = 2
LN_EPS = 1e-5     # torch.nn.LayerNorm default
NEG_INF = -1e9    # finite additive mask value (exp underflows to exactly 0)

BS = BATCH * SEQ
HEAD_DIM = EMB_DIM // N_HEADS
VOCAB_PAD = 128   # lane-dense padded vocab for the output projection
OUT_ROWS = 8      # sublane-dense padded batch rows for the output slab


# ------------------------------- kernel helpers ------------------------------
def _layernorm(x, w, b):
    mu = jnp.mean(x, axis=-1, keepdims=True)
    var = jnp.mean(jnp.square(x - mu), axis=-1, keepdims=True)
    return (x - mu) * jax.lax.rsqrt(var + LN_EPS) * w + b


def _mx(x):
    # bf16 MXU operands (native on v6e/v7x, supported on v5e); accumulation is f32
    # via preferred_element_type at every dot.  Pointwise math stays f32.
    return x.astype(jnp.bfloat16)


# --------------------------- fully-fused forward kernel ----------------------
def fused_transformer_kernel(
        tok_ref, emb_ref, pe_ref, bias_ref, hmask_ref, sel_ref,
        wqkv_ref, bqkv_ref, wo_ref, bo_ref,
        w1_ref, b1_ref, w2_ref, b2_ref,
        ln1w_ref, ln1b_ref, ln2w_ref, ln2b_ref,
        pw_ref, pb_ref, o_ref):
    D = EMB_DIM
    scale = 1.0 / math.sqrt(HEAD_DIM)

    # ---- embedding gather as one-hot matmul (MXU) + positional encoding ----
    # (quixer baseline adds PE to the raw embedding: no sqrt(d_model) scale)
    tok = tok_ref[...]                                                # (BS, 1) int32
    vocab_iota = jax.lax.broadcasted_iota(jnp.int32, (BS, VOCAB), 1)
    onehot = (vocab_iota == tok).astype(jnp.float32)                  # (BS, V)
    x = jnp.dot(_mx(onehot), emb_ref[...],
                preferred_element_type=jnp.float32) + pe_ref[...]     # (BS, D) f32

    bias2d = bias_ref[...]   # (BS, BS) additive causal + block-diagonal mask
    hmask = hmask_ref[...]   # (H, 1, D)  per-head channel mask (f32)

    # N_LAYERS is small: static unroll keeps everything visible to the scheduler.
    for l in range(N_LAYERS):
        # --- fused Q/K/V projection: one (BS,D)@(D,3D) MXU push per layer ---
        qkv = jnp.dot(_mx(x), wqkv_ref[l],
                      preferred_element_type=jnp.float32) + bqkv_ref[l]
        q = qkv[:, :D]
        k = qkv[:, D:2 * D]
        v = qkv[:, 2 * D:]

        # --- stacked heads: one score matmul, one softmax, one PV matmul ---
        # q masked to head-h channels dotted with full k == q_h . k_h
        q_stack = (q[None] * hmask).reshape(N_HEADS * BS, D)          # (H*BS, D)
        s = jnp.einsum('nd,md->nm', _mx(q_stack), _mx(k),
                       preferred_element_type=jnp.float32) * scale    # (H*BS, BS)
        s = s.reshape(N_HEADS, BS, BS) + bias2d                       # bcast over H
        # No row-max subtraction (bounded activations; -1e9 mask underflows to 0).
        p = jnp.exp(s)
        p = p * pl.reciprocal(jnp.sum(p, axis=-1, keepdims=True), approx=True)
        pv = jnp.dot(_mx(p.reshape(N_HEADS * BS, BS)), _mx(v),
                     preferred_element_type=jnp.float32)              # (H*BS, D)
        # keep only head h's channels from block h; concat-by-sum over heads
        attn = jnp.sum(pv.reshape(N_HEADS, BS, D) * hmask, axis=0)    # (BS, D)

        # attention output projection
        attn = jnp.dot(_mx(attn), wo_ref[l],
                       preferred_element_type=jnp.float32) + bo_ref[l]

        # --- post-norm encoder layer: residual + LN1, FFN (relu), residual + LN2 ---
        y = _layernorm(x + attn, ln1w_ref[l], ln1b_ref[l])
        h1 = jnp.maximum(
            jnp.dot(_mx(y), w1_ref[l],
                    preferred_element_type=jnp.float32) + b1_ref[l], 0.0)
        ff = jnp.dot(_mx(h1), w2_ref[l],
                     preferred_element_type=jnp.float32) + b2_ref[l]
        x = _layernorm(y + ff, ln2w_ref[l], ln2b_ref[l])

    # ---- last-token selection (tiny exact f32 MXU select) + lane-dense projection ----
    x_last = jnp.dot(sel_ref[...], x, preferred_element_type=jnp.float32)  # (8, D)
    o_ref[...] = jnp.dot(_mx(x_last), pw_ref[...],
                         preferred_element_type=jnp.float32) + pb_ref[...]  # (8, 128)


# --------------------------------- glue (JAX) --------------------------------
def sinusoidal_pe(max_len, d_model):
    position = jnp.arange(max_len, dtype=jnp.float32)[:, None]
    div_term = jnp.exp(jnp.arange(0, d_model, 2, dtype=jnp.float32)
                       * (-math.log(10000.0) / d_model))
    pe = jnp.zeros((max_len, d_model), jnp.float32)
    pe = pe.at[:, 0::2].set(jnp.sin(position * div_term))
    pe = pe.at[:, 1::2].set(jnp.cos(position * div_term))
    return pe


def init_params(key):
    scale = 0.1
    keys = iter(jax.random.split(key, 10))
    nrm = lambda shape: (scale * jax.random.normal(next(keys), shape)).astype(jnp.float32)
    zeros = lambda shape: jnp.zeros(shape, jnp.float32)
    ones = lambda shape: jnp.ones(shape, jnp.float32)
    L, D, H, V = N_LAYERS, EMB_DIM, HID_DIM, VOCAB
    bf = jnp.bfloat16
    # final projection padded to a lane-dense 128-wide vocab
    proj_w = jnp.zeros((D, VOCAB_PAD), jnp.float32).at[:, :V].set(nrm((D, V)))
    return {
        # MXU weights pre-transposed to (in, out) layout and stored bf16
        'emb': nrm((V, D)).astype(bf),
        'pe': sinusoidal_pe(SEQ, D),
        'proj_w': proj_w.astype(bf),
        'proj_b': zeros((1, VOCAB_PAD)),
        # per-layer weights stacked on a leading layer axis; QKV fused
        'wqkv': nrm((L, D, 3 * D)).astype(bf), 'bqkv': zeros((L, 1, 3 * D)),
        'wo': nrm((L, D, D)).astype(bf),       'bo': zeros((L, 1, D)),
        'w1': nrm((L, D, H)).astype(bf),       'b1': zeros((L, 1, H)),
        'w2': nrm((L, H, D)).astype(bf),       'b2': zeros((L, 1, D)),
        'ln1w': ones((L, 1, D)), 'ln1b': zeros((L, 1, D)),
        'ln2w': ones((L, 1, D)), 'ln2b': zeros((L, 1, D)),
    }


def transformer_forward(tokens, params):
    B, S = tokens.shape
    bs = B * S

    # fold batch into the sublane axis: tokens as a (B*S, 1) column
    tok = tokens.reshape(bs, 1).astype(jnp.int32)
    pe_bs = jnp.tile(params['pe'][:S], (B, 1))                        # (BS, D)

    # constant: additive attention bias (causal within each sample, block-diag
    # across samples) — single (BS, BS) slab, broadcast over heads in-kernel.
    pos = jnp.arange(bs)
    same_sample = (pos[:, None] // S) == (pos[None, :] // S)
    causal = (pos[:, None] % S) >= (pos[None, :] % S)
    bias2d = jnp.where(same_sample & causal, 0.0, NEG_INF).astype(jnp.float32)

    # constant: per-head channel mask (H, 1, D)
    head_of_ch = jnp.arange(EMB_DIM) // HEAD_DIM
    hmask = (head_of_ch[None, :] ==
             jnp.arange(N_HEADS)[:, None]).astype(jnp.float32)[:, None, :]

    # constant: last-token selector, padded to 8 sublane-dense output rows
    sel = jnp.zeros((OUT_ROWS, bs), jnp.float32).at[
        jnp.arange(B), jnp.arange(B) * S + (S - 1)].set(1.0)

    vmem = pl.BlockSpec(memory_space=pltpu.MemorySpace.VMEM)
    inputs = (tok, params['emb'], pe_bs, bias2d, hmask, sel,
              params['wqkv'], params['bqkv'], params['wo'], params['bo'],
              params['w1'], params['b1'], params['w2'], params['b2'],
              params['ln1w'], params['ln1b'], params['ln2w'], params['ln2b'],
              params['proj_w'], params['proj_b'])

    out = pl.pallas_call(
        fused_transformer_kernel,
        in_specs=[vmem] * len(inputs),
        out_specs=vmem,
        out_shape=jax.ShapeDtypeStruct((OUT_ROWS, VOCAB_PAD), jnp.float32),
        cost_estimate=pl.CostEstimate(flops=800_000, transcendentals=2_048,
                                      bytes_accessed=160_000),
    )(*inputs)
    # slice the lane/sublane-padded output back to (B, VOCAB)
    return out[:B, :VOCAB], None                                      # matches torch forward


# ----------------------------------- main ------------------------------------
if __name__ == "__main__":
    key = jax.random.PRNGKey(0)
    pkey, tkey = jax.random.split(key)
    params = init_params(pkey)
    tokens = jax.random.randint(tkey, (BATCH, SEQ), 0, VOCAB, dtype=jnp.int32)

    logits, aux = jax.jit(transformer_forward)(tokens, params)
    logits = jax.block_until_ready(logits)

    assert logits.shape == (BATCH, VOCAB)
    assert aux is None
    assert bool(jnp.all(jnp.isfinite(logits)))
    print("KERNEL_OK")
</pallas_src>

<mosaic_0001>
module attributes {stable_mosaic.version = 11 : i64} {
  func.func @fused_transformer_kernel(%arg0: memref<16x1xi32, #tpu.memory_space<vmem>>, %arg1: memref<64x32xbf16, #tpu.memory_space<vmem>>, %arg2: memref<16x32xf32, #tpu.memory_space<vmem>>, %arg3: memref<16x16xf32, #tpu.memory_space<vmem>>, %arg4: memref<4x1x32xf32, #tpu.memory_space<vmem>>, %arg5: memref<8x16xf32, #tpu.memory_space<vmem>>, %arg6: memref<2x32x96xbf16, #tpu.memory_space<vmem>>, %arg7: memref<2x1x96xf32, #tpu.memory_space<vmem>>, %arg8: memref<2x32x32xbf16, #tpu.memory_space<vmem>>, %arg9: memref<2x1x32xf32, #tpu.memory_space<vmem>>, %arg10: memref<2x32x64xbf16, #tpu.memory_space<vmem>>, %arg11: memref<2x1x64xf32, #tpu.memory_space<vmem>>, %arg12: memref<2x64x32xbf16, #tpu.memory_space<vmem>>, %arg13: memref<2x1x32xf32, #tpu.memory_space<vmem>>, %arg14: memref<2x1x32xf32, #tpu.memory_space<vmem>>, %arg15: memref<2x1x32xf32, #tpu.memory_space<vmem>>, %arg16: memref<2x1x32xf32, #tpu.memory_space<vmem>>, %arg17: memref<2x1x32xf32, #tpu.memory_space<vmem>>, %arg18: memref<32x128xbf16, #tpu.memory_space<vmem>>, %arg19: memref<1x128xf32, #tpu.memory_space<vmem>>, %arg20: memref<8x128xf32, #tpu.memory_space<vmem>>) attributes {dimension_semantics = [], scalar_prefetch = 0 : i64, scratch_operands = 0 : i64, tpu.core_type = #tpu.core_type<tc>} {
    %c0 = arith.constant 0 : index
    %c0_0 = arith.constant 0 : index
    %0 = vector.load %arg0[%c0, %c0_0] : memref<16x1xi32, #tpu.memory_space<vmem>>, vector<16x1xi32>
    %1 = tpu.iota {dimensions = array<i32: 1>} : vector<16x64xi32>
    %2 = vector.broadcast %0 : vector<16x1xi32> to vector<16x64xi32>
    %3 = arith.cmpi eq, %1, %2 : vector<16x64xi32>
    %4 = arith.extui %3 : vector<16x64xi1> to vector<16x64xi32>
    %5 = arith.sitofp %4 : vector<16x64xi32> to vector<16x64xf32>
    %6 = arith.truncf %5 : vector<16x64xf32> to vector<16x64xbf16>
    %c0_1 = arith.constant 0 : index
    %c0_2 = arith.constant 0 : index
    %7 = vector.load %arg1[%c0_1, %c0_2] : memref<64x32xbf16, #tpu.memory_space<vmem>>, vector<64x32xbf16>
    %cst = arith.constant dense<0.000000e+00> : vector<16x32xf32>
    %8 = tpu.matmul %6, %7, %cst {dimension_numbers = #tpu.dot_dimension_numbers<[1], [0], [0], [1], [0, 0, 1, 1], [], []>} : vector<16x64xbf16>, vector<64x32xbf16>, vector<16x32xf32> -> vector<16x32xf32>
    %c0_3 = arith.constant 0 : index
    %c0_4 = arith.constant 0 : index
    %9 = vector.load %arg2[%c0_3, %c0_4] : memref<16x32xf32, #tpu.memory_space<vmem>>, vector<16x32xf32>
    %10 = arith.addf %8, %9 : vector<16x32xf32>
    %c0_5 = arith.constant 0 : index
    %c0_6 = arith.constant 0 : index
    %11 = vector.load %arg3[%c0_5, %c0_6] : memref<16x16xf32, #tpu.memory_space<vmem>>, vector<16x16xf32>
    %c0_7 = arith.constant 0 : index
    %c0_8 = arith.constant 0 : index
    %c0_9 = arith.constant 0 : index
    %12 = vector.load %arg4[%c0_7, %c0_8, %c0_9] : memref<4x1x32xf32, #tpu.memory_space<vmem>>, vector<4x1x32xf32>
    %13 = arith.truncf %10 : vector<16x32xf32> to vector<16x32xbf16>
    %c0_10 = arith.constant 0 : index
    %c0_11 = arith.constant 0 : index
    %c0_12 = arith.constant 0 : index
    %14 = vector.load %arg6[%c0_10, %c0_11, %c0_12] : memref<2x32x96xbf16, #tpu.memory_space<vmem>>, vector<1x32x96xbf16>
    %15 = vector.shape_cast %14 : vector<1x32x96xbf16> to vector<32x96xbf16>
    %cst_13 = arith.constant dense<0.000000e+00> : vector<16x96xf32>
    %16 = tpu.matmul %13, %15, %cst_13 {dimension_numbers = #tpu.dot_dimension_numbers<[1], [0], [0], [1], [0, 0, 1, 1], [], []>} : vector<16x32xbf16>, vector<32x96xbf16>, vector<16x96xf32> -> vector<16x96xf32>
    %c0_14 = arith.constant 0 : index
    %c0_15 = arith.constant 0 : index
    %c0_16 = arith.constant 0 : index
    %17 = vector.load %arg7[%c0_14, %c0_15, %c0_16] : memref<2x1x96xf32, #tpu.memory_space<vmem>>, vector<1x1x96xf32>
    %18 = vector.shape_cast %17 : vector<1x1x96xf32> to vector<1x96xf32>
    %19 = vector.broadcast %18 : vector<1x96xf32> to vector<16x96xf32>
    %20 = arith.addf %16, %19 : vector<16x96xf32>
    %21 = vector.extract_strided_slice %20 {offsets = [0, 0], sizes = [16, 32], strides = [1, 1]} : vector<16x96xf32> to vector<16x32xf32>
    %22 = vector.extract_strided_slice %20 {offsets = [0, 32], sizes = [16, 32], strides = [1, 1]} : vector<16x96xf32> to vector<16x32xf32>
    %23 = vector.extract_strided_slice %20 {offsets = [0, 64], sizes = [16, 32], strides = [1, 1]} : vector<16x96xf32> to vector<16x32xf32>
    %24 = vector.shape_cast %21 : vector<16x32xf32> to vector<1x16x32xf32>
    %25 = vector.broadcast %24 : vector<1x16x32xf32> to vector<4x16x32xf32>
    %26 = vector.broadcast %12 : vector<4x1x32xf32> to vector<4x16x32xf32>
    %27 = arith.mulf %25, %26 : vector<4x16x32xf32>
    %28 = vector.shape_cast %27 : vector<4x16x32xf32> to vector<64x32xf32>
    %29 = arith.truncf %28 : vector<64x32xf32> to vector<64x32xbf16>
    %30 = arith.truncf %22 : vector<16x32xf32> to vector<16x32xbf16>
    "tpu.trace_start"() <{level = 10 : i32, message = "nd,md->nm"}> : () -> ()
    %cst_17 = arith.constant dense<0.000000e+00> : vector<64x16xf32>
    %31 = tpu.matmul %29, %30, %cst_17 {dimension_numbers = #tpu.dot_dimension_numbers<[1], [1], [0], [0], [0, 0, 1, 0], [], []>} : vector<64x32xbf16>, vector<16x32xbf16>, vector<64x16xf32> -> vector<64x16xf32>
    "tpu.trace_stop"() : () -> ()
    %cst_18 = arith.constant 0.353553385 : f32
    %32 = vector.broadcast %cst_18 : f32 to vector<64x16xf32>
    %33 = arith.mulf %31, %32 : vector<64x16xf32>
    %34 = vector.shape_cast %33 : vector<64x16xf32> to vector<4x16x16xf32>
    %35 = vector.shape_cast %11 : vector<16x16xf32> to vector<1x16x16xf32>
    %36 = vector.broadcast %35 : vector<1x16x16xf32> to vector<4x16x16xf32>
    %37 = arith.addf %34, %36 : vector<4x16x16xf32>
    %38 = math.exp %37 : vector<4x16x16xf32>
    %cst_19 = arith.constant dense<0.000000e+00> : vector<4x16xf32>
    %39 = vector.multi_reduction <add>, %38, %cst_19 [2] : vector<4x16x16xf32> to vector<4x16xf32>
    %40 = vector.shape_cast %39 : vector<4x16xf32> to vector<4x16x1xf32>
    %41 = tpu.reciprocal %40 {approx = true} : vector<4x16x1xf32> -> vector<4x16x1xf32>
    %42 = vector.broadcast %41 : vector<4x16x1xf32> to vector<4x16x16xf32>
    %43 = arith.mulf %38, %42 : vector<4x16x16xf32>
    %44 = vector.shape_cast %43 : vector<4x16x16xf32> to vector<64x16xf32>
    %45 = arith.truncf %44 : vector<64x16xf32> to vector<64x16xbf16>
    %46 = arith.truncf %23 : vector<16x32xf32> to vector<16x32xbf16>
    %cst_20 = arith.constant dense<0.000000e+00> : vector<64x32xf32>
    %47 = tpu.matmul %45, %46, %cst_20 {dimension_numbers = #tpu.dot_dimension_numbers<[1], [0], [0], [1], [0, 0, 1, 1], [], []>} : vector<64x16xbf16>, vector<16x32xbf16>, vector<64x32xf32> -> vector<64x32xf32>
    %48 = vector.shape_cast %47 : vector<64x32xf32> to vector<4x16x32xf32>
    %49 = vector.broadcast %12 : vector<4x1x32xf32> to vector<4x16x32xf32>
    %50 = arith.mulf %48, %49 : vector<4x16x32xf32>
    %cst_21 = arith.constant dense<0.000000e+00> : vector<16x32xf32>
    %51 = vector.multi_reduction <add>, %50, %cst_21 [0] : vector<4x16x32xf32> to vector<16x32xf32>
    %52 = arith.truncf %51 : vector<16x32xf32> to vector<16x32xbf16>
    %c0_22 = arith.constant 0 : index
    %c0_23 = arith.constant 0 : index
    %c0_24 = arith.constant 0 : index
    %53 = vector.load %arg8[%c0_22, %c0_23, %c0_24] : memref<2x32x32xbf16, #tpu.memory_space<vmem>>, vector<1x32x32xbf16>
    %54 = vector.shape_cast %53 : vector<1x32x32xbf16> to vector<32x32xbf16>
    %cst_25 = arith.constant dense<0.000000e+00> : vector<16x32xf32>
    %55 = tpu.matmul %52, %54, %cst_25 {dimension_numbers = #tpu.dot_dimension_numbers<[1], [0], [0], [1], [0, 0, 1, 1], [], []>} : vector<16x32xbf16>, vector<32x32xbf16>, vector<16x32xf32> -> vector<16x32xf32>
    %c0_26 = arith.constant 0 : index
    %c0_27 = arith.constant 0 : index
    %c0_28 = arith.constant 0 : index
    %56 = vector.load %arg9[%c0_26, %c0_27, %c0_28] : memref<2x1x32xf32, #tpu.memory_space<vmem>>, vector<1x1x32xf32>
    %57 = vector.shape_cast %56 : vector<1x1x32xf32> to vector<1x32xf32>
    %58 = vector.broadcast %57 : vector<1x32xf32> to vector<16x32xf32>
    %59 = arith.addf %55, %58 : vector<16x32xf32>
    %60 = arith.addf %10, %59 : vector<16x32xf32>
    %c0_29 = arith.constant 0 : index
    %c0_30 = arith.constant 0 : index
    %c0_31 = arith.constant 0 : index
    %61 = vector.load %arg14[%c0_29, %c0_30, %c0_31] : memref<2x1x32xf32, #tpu.memory_space<vmem>>, vector<1x1x32xf32>
    %62 = vector.shape_cast %61 : vector<1x1x32xf32> to vector<1x32xf32>
    %c0_32 = arith.constant 0 : index
    %c0_33 = arith.constant 0 : index
    %c0_34 = arith.constant 0 : index
    %63 = vector.load %arg15[%c0_32, %c0_33, %c0_34] : memref<2x1x32xf32, #tpu.memory_space<vmem>>, vector<1x1x32xf32>
    %64 = vector.shape_cast %63 : vector<1x1x32xf32> to vector<1x32xf32>
    %cst_35 = arith.constant dense<0.000000e+00> : vector<16xf32>
    %65 = vector.multi_reduction <add>, %60, %cst_35 [1] : vector<16x32xf32> to vector<16xf32>
    %66 = vector.shape_cast %65 : vector<16xf32> to vector<16x1xf32>
    %cst_36 = arith.constant 3.200000e+01 : f32
    %67 = vector.broadcast %cst_36 : f32 to vector<16x1xf32>
    %68 = arith.divf %66, %67 : vector<16x1xf32>
    %69 = vector.broadcast %68 : vector<16x1xf32> to vector<16x32xf32>
    %70 = arith.subf %60, %69 : vector<16x32xf32>
    %71 = arith.mulf %70, %70 : vector<16x32xf32>
    %cst_37 = arith.constant dense<0.000000e+00> : vector<16xf32>
    %72 = vector.multi_reduction <add>, %71, %cst_37 [1] : vector<16x32xf32> to vector<16xf32>
    %73 = vector.shape_cast %72 : vector<16xf32> to vector<16x1xf32>
    %cst_38 = arith.constant 3.200000e+01 : f32
    %74 = vector.broadcast %cst_38 : f32 to vector<16x1xf32>
    %75 = arith.divf %73, %74 : vector<16x1xf32>
    %76 = vector.broadcast %68 : vector<16x1xf32> to vector<16x32xf32>
    %77 = arith.subf %60, %76 : vector<16x32xf32>
    %cst_39 = arith.constant 9.99999974E-6 : f32
    %78 = vector.broadcast %cst_39 : f32 to vector<16x1xf32>
    %79 = arith.addf %75, %78 : vector<16x1xf32>
    %80 = math.rsqrt %79 : vector<16x1xf32>
    %81 = vector.broadcast %80 : vector<16x1xf32> to vector<16x32xf32>
    %82 = arith.mulf %77, %81 : vector<16x32xf32>
    %83 = vector.broadcast %62 : vector<1x32xf32> to vector<16x32xf32>
    %84 = arith.mulf %82, %83 : vector<16x32xf32>
    %85 = vector.broadcast %64 : vector<1x32xf32> to vector<16x32xf32>
    %86 = arith.addf %84, %85 : vector<16x32xf32>
    %87 = arith.truncf %86 : vector<16x32xf32> to vector<16x32xbf16>
    %c0_40 = arith.constant 0 : index
    %c0_41 = arith.constant 0 : index
    %c0_42 = arith.constant 0 : index
    %88 = vector.load %arg10[%c0_40, %c0_41, %c0_42] : memref<2x32x64xbf16, #tpu.memory_space<vmem>>, vector<1x32x64xbf16>
    %89 = vector.shape_cast %88 : vector<1x32x64xbf16> to vector<32x64xbf16>
    %cst_43 = arith.constant dense<0.000000e+00> : vector<16x64xf32>
    %90 = tpu.matmul %87, %89, %cst_43 {dimension_numbers = #tpu.dot_dimension_numbers<[1], [0], [0], [1], [0, 0, 1, 1], [], []>} : vector<16x32xbf16>, vector<32x64xbf16>, vector<16x64xf32> -> vector<16x64xf32>
    %c0_44 = arith.constant 0 : index
    %c0_45 = arith.constant 0 : index
    %c0_46 = arith.constant 0 : index
    %91 = vector.load %arg11[%c0_44, %c0_45, %c0_46] : memref<2x1x64xf32, #tpu.memory_space<vmem>>, vector<1x1x64xf32>
    %92 = vector.shape_cast %91 : vector<1x1x64xf32> to vector<1x64xf32>
    %93 = vector.broadcast %92 : vector<1x64xf32> to vector<16x64xf32>
    %94 = arith.addf %90, %93 : vector<16x64xf32>
    %cst_47 = arith.constant 0.000000e+00 : f32
    %95 = vector.broadcast %cst_47 : f32 to vector<16x64xf32>
    %96 = arith.maximumf %94, %95 : vector<16x64xf32>
    %97 = arith.truncf %96 : vector<16x64xf32> to vector<16x64xbf16>
    %c0_48 = arith.constant 0 : index
    %c0_49 = arith.constant 0 : index
    %c0_50 = arith.constant 0 : index
    %98 = vector.load %arg12[%c0_48, %c0_49, %c0_50] : memref<2x64x32xbf16, #tpu.memory_space<vmem>>, vector<1x64x32xbf16>
    %99 = vector.shape_cast %98 : vector<1x64x32xbf16> to vector<64x32xbf16>
    %cst_51 = arith.constant dense<0.000000e+00> : vector<16x32xf32>
    %100 = tpu.matmul %97, %99, %cst_51 {dimension_numbers = #tpu.dot_dimension_numbers<[1], [0], [0], [1], [0, 0, 1, 1], [], []>} : vector<16x64xbf16>, vector<64x32xbf16>, vector<16x32xf32> -> vector<16x32xf32>
    %c0_52 = arith.constant 0 : index
    %c0_53 = arith.constant 0 : index
    %c0_54 = arith.constant 0 : index
    %101 = vector.load %arg13[%c0_52, %c0_53, %c0_54] : memref<2x1x32xf32, #tpu.memory_space<vmem>>, vector<1x1x32xf32>
    %102 = vector.shape_cast %101 : vector<1x1x32xf32> to vector<1x32xf32>
    %103 = vector.broadcast %102 : vector<1x32xf32> to vector<16x32xf32>
    %104 = arith.addf %100, %103 : vector<16x32xf32>
    %105 = arith.addf %86, %104 : vector<16x32xf32>
    %c0_55 = arith.constant 0 : index
    %c0_56 = arith.constant 0 : index
    %c0_57 = arith.constant 0 : index
    %106 = vector.load %arg16[%c0_55, %c0_56, %c0_57] : memref<2x1x32xf32, #tpu.memory_space<vmem>>, vector<1x1x32xf32>
    %107 = vector.shape_cast %106 : vector<1x1x32xf32> to vector<1x32xf32>
    %c0_58 = arith.constant 0 : index
    %c0_59 = arith.constant 0 : index
    %c0_60 = arith.constant 0 : index
    %108 = vector.load %arg17[%c0_58, %c0_59, %c0_60] : memref<2x1x32xf32, #tpu.memory_space<vmem>>, vector<1x1x32xf32>
    %109 = vector.shape_cast %108 : vector<1x1x32xf32> to vector<1x32xf32>
    %cst_61 = arith.constant dense<0.000000e+00> : vector<16xf32>
    %110 = vector.multi_reduction <add>, %105, %cst_61 [1] : vector<16x32xf32> to vector<16xf32>
    %111 = vector.shape_cast %110 : vector<16xf32> to vector<16x1xf32>
    %cst_62 = arith.constant 3.200000e+01 : f32
    %112 = vector.broadcast %cst_62 : f32 to vector<16x1xf32>
    %113 = arith.divf %111, %112 : vector<16x1xf32>
    %114 = vector.broadcast %113 : vector<16x1xf32> to vector<16x32xf32>
    %115 = arith.subf %105, %114 : vector<16x32xf32>
    %116 = arith.mulf %115, %115 : vector<16x32xf32>
    %cst_63 = arith.constant dense<0.000000e+00> : vector<16xf32>
    %117 = vector.multi_reduction <add>, %116, %cst_63 [1] : vector<16x32xf32> to vector<16xf32>
    %118 = vector.shape_cast %117 : vector<16xf32> to vector<16x1xf32>
    %cst_64 = arith.constant 3.200000e+01 : f32
    %119 = vector.broadcast %cst_64 : f32 to vector<16x1xf32>
    %120 = arith.divf %118, %119 : vector<16x1xf32>
    %121 = vector.broadcast %113 : vector<16x1xf32> to vector<16x32xf32>
    %122 = arith.subf %105, %121 : vector<16x32xf32>
    %cst_65 = arith.constant 9.99999974E-6 : f32
    %123 = vector.broadcast %cst_65 : f32 to vector<16x1xf32>
    %124 = arith.addf %120, %123 : vector<16x1xf32>
    %125 = math.rsqrt %124 : vector<16x1xf32>
    %126 = vector.broadcast %125 : vector<16x1xf32> to vector<16x32xf32>
    %127 = arith.mulf %122, %126 : vector<16x32xf32>
    %128 = vector.broadcast %107 : vector<1x32xf32> to vector<16x32xf32>
    %129 = arith.mulf %127, %128 : vector<16x32xf32>
    %130 = vector.broadcast %109 : vector<1x32xf32> to vector<16x32xf32>
    %131 = arith.addf %129, %130 : vector<16x32xf32>
    %132 = arith.truncf %131 : vector<16x32xf32> to vector<16x32xbf16>
    %c1 = arith.constant 1 : index
    %c0_66 = arith.constant 0 : index
    %c0_67 = arith.constant 0 : index
    %133 = vector.load %arg6[%c1, %c0_66, %c0_67] : memref<2x32x96xbf16, #tpu.memory_space<vmem>>, vector<1x32x96xbf16>
    %134 = vector.shape_cast %133 : vector<1x32x96xbf16> to vector<32x96xbf16>
    %cst_68 = arith.constant dense<0.000000e+00> : vector<16x96xf32>
    %135 = tpu.matmul %132, %134, %cst_68 {dimension_numbers = #tpu.dot_dimension_numbers<[1], [0], [0], [1], [0, 0, 1, 1], [], []>} : vector<16x32xbf16>, vector<32x96xbf16>, vector<16x96xf32> -> vector<16x96xf32>
    %c1_69 = arith.constant 1 : index
    %c0_70 = arith.constant 0 : index
    %c0_71 = arith.constant 0 : index
    %136 = vector.load %arg7[%c1_69, %c0_70, %c0_71] : memref<2x1x96xf32, #tpu.memory_space<vmem>>, vector<1x1x96xf32>
    %137 = vector.shape_cast %136 : vector<1x1x96xf32> to vector<1x96xf32>
    %138 = vector.broadcast %137 : vector<1x96xf32> to vector<16x96xf32>
    %139 = arith.addf %135, %138 : vector<16x96xf32>
    %140 = vector.extract_strided_slice %139 {offsets = [0, 0], sizes = [16, 32], strides = [1, 1]} : vector<16x96xf32> to vector<16x32xf32>
    %141 = vector.extract_strided_slice %139 {offsets = [0, 32], sizes = [16, 32], strides = [1, 1]} : vector<16x96xf32> to vector<16x32xf32>
    %142 = vector.extract_strided_slice %139 {offsets = [0, 64], sizes = [16, 32], strides = [1, 1]} : vector<16x96xf32> to vector<16x32xf32>
    %143 = vector.shape_cast %140 : vector<16x32xf32> to vector<1x16x32xf32>
    %144 = vector.broadcast %143 : vector<1x16x32xf32> to vector<4x16x32xf32>
    %145 = vector.broadcast %12 : vector<4x1x32xf32> to vector<4x16x32xf32>
    %146 = arith.mulf %144, %145 : vector<4x16x32xf32>
    %147 = vector.shape_cast %146 : vector<4x16x32xf32> to vector<64x32xf32>
    %148 = arith.truncf %147 : vector<64x32xf32> to vector<64x32xbf16>
    %149 = arith.truncf %141 : vector<16x32xf32> to vector<16x32xbf16>
    "tpu.trace_start"() <{level = 10 : i32, message = "nd,md->nm"}> : () -> ()
    %cst_72 = arith.constant dense<0.000000e+00> : vector<64x16xf32>
    %150 = tpu.matmul %148, %149, %cst_72 {dimension_numbers = #tpu.dot_dimension_numbers<[1], [1], [0], [0], [0, 0, 1, 0], [], []>} : vector<64x32xbf16>, vector<16x32xbf16>, vector<64x16xf32> -> vector<64x16xf32>
    "tpu.trace_stop"() : () -> ()
    %cst_73 = arith.constant 0.353553385 : f32
    %151 = vector.broadcast %cst_73 : f32 to vector<64x16xf32>
    %152 = arith.mulf %150, %151 : vector<64x16xf32>
    %153 = vector.shape_cast %152 : vector<64x16xf32> to vector<4x16x16xf32>
    %154 = vector.shape_cast %11 : vector<16x16xf32> to vector<1x16x16xf32>
    %155 = vector.broadcast %154 : vector<1x16x16xf32> to vector<4x16x16xf32>
    %156 = arith.addf %153, %155 : vector<4x16x16xf32>
    %157 = math.exp %156 : vector<4x16x16xf32>
    %cst_74 = arith.constant dense<0.000000e+00> : vector<4x16xf32>
    %158 = vector.multi_reduction <add>, %157, %cst_74 [2] : vector<4x16x16xf32> to vector<4x16xf32>
    %159 = vector.shape_cast %158 : vector<4x16xf32> to vector<4x16x1xf32>
    %160 = tpu.reciprocal %159 {approx = true} : vector<4x16x1xf32> -> vector<4x16x1xf32>
    %161 = vector.broadcast %160 : vector<4x16x1xf32> to vector<4x16x16xf32>
    %162 = arith.mulf %157, %161 : vector<4x16x16xf32>
    %163 = vector.shape_cast %162 : vector<4x16x16xf32> to vector<64x16xf32>
    %164 = arith.truncf %163 : vector<64x16xf32> to vector<64x16xbf16>
    %165 = arith.truncf %142 : vector<16x32xf32> to vector<16x32xbf16>
    %cst_75 = arith.constant dense<0.000000e+00> : vector<64x32xf32>
    %166 = tpu.matmul %164, %165, %cst_75 {dimension_numbers = #tpu.dot_dimension_numbers<[1], [0], [0], [1], [0, 0, 1, 1], [], []>} : vector<64x16xbf16>, vector<16x32xbf16>, vector<64x32xf32> -> vector<64x32xf32>
    %167 = vector.shape_cast %166 : vector<64x32xf32> to vector<4x16x32xf32>
    %168 = vector.broadcast %12 : vector<4x1x32xf32> to vector<4x16x32xf32>
    %169 = arith.mulf %167, %168 : vector<4x16x32xf32>
    %cst_76 = arith.constant dense<0.000000e+00> : vector<16x32xf32>
    %170 = vector.multi_reduction <add>, %169, %cst_76 [0] : vector<4x16x32xf32> to vector<16x32xf32>
    %171 = arith.truncf %170 : vector<16x32xf32> to vector<16x32xbf16>
    %c1_77 = arith.constant 1 : index
    %c0_78 = arith.constant 0 : index
    %c0_79 = arith.constant 0 : index
    %172 = vector.load %arg8[%c1_77, %c0_78, %c0_79] : memref<2x32x32xbf16, #tpu.memory_space<vmem>>, vector<1x32x32xbf16>
    %173 = vector.shape_cast %172 : vector<1x32x32xbf16> to vector<32x32xbf16>
    %cst_80 = arith.constant dense<0.000000e+00> : vector<16x32xf32>
    %174 = tpu.matmul %171, %173, %cst_80 {dimension_numbers = #tpu.dot_dimension_numbers<[1], [0], [0], [1], [0, 0, 1, 1], [], []>} : vector<16x32xbf16>, vector<32x32xbf16>, vector<16x32xf32> -> vector<16x32xf32>
    %c1_81 = arith.constant 1 : index
    %c0_82 = arith.constant 0 : index
    %c0_83 = arith.constant 0 : index
    %175 = vector.load %arg9[%c1_81, %c0_82, %c0_83] : memref<2x1x32xf32, #tpu.memory_space<vmem>>, vector<1x1x32xf32>
    %176 = vector.shape_cast %175 : vector<1x1x32xf32> to vector<1x32xf32>
    %177 = vector.broadcast %176 : vector<1x32xf32> to vector<16x32xf32>
    %178 = arith.addf %174, %177 : vector<16x32xf32>
    %179 = arith.addf %131, %178 : vector<16x32xf32>
    %c1_84 = arith.constant 1 : index
    %c0_85 = arith.constant 0 : index
    %c0_86 = arith.constant 0 : index
    %180 = vector.load %arg14[%c1_84, %c0_85, %c0_86] : memref<2x1x32xf32, #tpu.memory_space<vmem>>, vector<1x1x32xf32>
    %181 = vector.shape_cast %180 : vector<1x1x32xf32> to vector<1x32xf32>
    %c1_87 = arith.constant 1 : index
    %c0_88 = arith.constant 0 : index
    %c0_89 = arith.constant 0 : index
    %182 = vector.load %arg15[%c1_87, %c0_88, %c0_89] : memref<2x1x32xf32, #tpu.memory_space<vmem>>, vector<1x1x32xf32>
    %183 = vector.shape_cast %182 : vector<1x1x32xf32> to vector<1x32xf32>
    %cst_90 = arith.constant dense<0.000000e+00> : vector<16xf32>
    %184 = vector.multi_reduction <add>, %179, %cst_90 [1] : vector<16x32xf32> to vector<16xf32>
    %185 = vector.shape_cast %184 : vector<16xf32> to vector<16x1xf32>
    %cst_91 = arith.constant 3.200000e+01 : f32
    %186 = vector.broadcast %cst_91 : f32 to vector<16x1xf32>
    %187 = arith.divf %185, %186 : vector<16x1xf32>
    %188 = vector.broadcast %187 : vector<16x1xf32> to vector<16x32xf32>
    %189 = arith.subf %179, %188 : vector<16x32xf32>
    %190 = arith.mulf %189, %189 : vector<16x32xf32>
    %cst_92 = arith.constant dense<0.000000e+00> : vector<16xf32>
    %191 = vector.multi_reduction <add>, %190, %cst_92 [1] : vector<16x32xf32> to vector<16xf32>
    %192 = vector.shape_cast %191 : vector<16xf32> to vector<16x1xf32>
    %cst_93 = arith.constant 3.200000e+01 : f32
    %193 = vector.broadcast %cst_93 : f32 to vector<16x1xf32>
    %194 = arith.divf %192, %193 : vector<16x1xf32>
    %195 = vector.broadcast %187 : vector<16x1xf32> to vector<16x32xf32>
    %196 = arith.subf %179, %195 : vector<16x32xf32>
    %cst_94 = arith.constant 9.99999974E-6 : f32
    %197 = vector.broadcast %cst_94 : f32 to vector<16x1xf32>
    %198 = arith.addf %194, %197 : vector<16x1xf32>
    %199 = math.rsqrt %198 : vector<16x1xf32>
    %200 = vector.broadcast %199 : vector<16x1xf32> to vector<16x32xf32>
    %201 = arith.mulf %196, %200 : vector<16x32xf32>
    %202 = vector.broadcast %181 : vector<1x32xf32> to vector<16x32xf32>
    %203 = arith.mulf %201, %202 : vector<16x32xf32>
    %204 = vector.broadcast %183 : vector<1x32xf32> to vector<16x32xf32>
    %205 = arith.addf %203, %204 : vector<16x32xf32>
    %206 = arith.truncf %205 : vector<16x32xf32> to vector<16x32xbf16>
    %c1_95 = arith.constant 1 : index
    %c0_96 = arith.constant 0 : index
    %c0_97 = arith.constant 0 : index
    %207 = vector.load %arg10[%c1_95, %c0_96, %c0_97] : memref<2x32x64xbf16, #tpu.memory_space<vmem>>, vector<1x32x64xbf16>
    %208 = vector.shape_cast %207 : vector<1x32x64xbf16> to vector<32x64xbf16>
    %cst_98 = arith.constant dense<0.000000e+00> : vector<16x64xf32>
    %209 = tpu.matmul %206, %208, %cst_98 {dimension_numbers = #tpu.dot_dimension_numbers<[1], [0], [0], [1], [0, 0, 1, 1], [], []>} : vector<16x32xbf16>, vector<32x64xbf16>, vector<16x64xf32> -> vector<16x64xf32>
    %c1_99 = arith.constant 1 : index
    %c0_100 = arith.constant 0 : index
    %c0_101 = arith.constant 0 : index
    %210 = vector.load %arg11[%c1_99, %c0_100, %c0_101] : memref<2x1x64xf32, #tpu.memory_space<vmem>>, vector<1x1x64xf32>
    %211 = vector.shape_cast %210 : vector<1x1x64xf32> to vector<1x64xf32>
    %212 = vector.broadcast %211 : vector<1x64xf32> to vector<16x64xf32>
    %213 = arith.addf %209, %212 : vector<16x64xf32>
    %cst_102 = arith.constant 0.000000e+00 : f32
    %214 = vector.broadcast %cst_102 : f32 to vector<16x64xf32>
    %215 = arith.maximumf %213, %214 : vector<16x64xf32>
    %216 = arith.truncf %215 : vector<16x64xf32> to vector<16x64xbf16>
    %c1_103 = arith.constant 1 : index
    %c0_104 = arith.constant 0 : index
    %c0_105 = arith.constant 0 : index
    %217 = vector.load %arg12[%c1_103, %c0_104, %c0_105] : memref<2x64x32xbf16, #tpu.memory_space<vmem>>, vector<1x64x32xbf16>
    %218 = vector.shape_cast %217 : vector<1x64x32xbf16> to vector<64x32xbf16>
    %cst_106 = arith.constant dense<0.000000e+00> : vector<16x32xf32>
    %219 = tpu.matmul %216, %218, %cst_106 {dimension_numbers = #tpu.dot_dimension_numbers<[1], [0], [0], [1], [0, 0, 1, 1], [], []>} : vector<16x64xbf16>, vector<64x32xbf16>, vector<16x32xf32> -> vector<16x32xf32>
    %c1_107 = arith.constant 1 : index
    %c0_108 = arith.constant 0 : index
    %c0_109 = arith.constant 0 : index
    %220 = vector.load %arg13[%c1_107, %c0_108, %c0_109] : memref<2x1x32xf32, #tpu.memory_space<vmem>>, vector<1x1x32xf32>
    %221 = vector.shape_cast %220 : vector<1x1x32xf32> to vector<1x32xf32>
    %222 = vector.broadcast %221 : vector<1x32xf32> to vector<16x32xf32>
    %223 = arith.addf %219, %222 : vector<16x32xf32>
    %224 = arith.addf %205, %223 : vector<16x32xf32>
    %c1_110 = arith.constant 1 : index
    %c0_111 = arith.constant 0 : index
    %c0_112 = arith.constant 0 : index
    %225 = vector.load %arg16[%c1_110, %c0_111, %c0_112] : memref<2x1x32xf32, #tpu.memory_space<vmem>>, vector<1x1x32xf32>
    %226 = vector.shape_cast %225 : vector<1x1x32xf32> to vector<1x32xf32>
    %c1_113 = arith.constant 1 : index
    %c0_114 = arith.constant 0 : index
    %c0_115 = arith.constant 0 : index
    %227 = vector.load %arg17[%c1_113, %c0_114, %c0_115] : memref<2x1x32xf32, #tpu.memory_space<vmem>>, vector<1x1x32xf32>
    %228 = vector.shape_cast %227 : vector<1x1x32xf32> to vector<1x32xf32>
    %cst_116 = arith.constant dense<0.000000e+00> : vector<16xf32>
    %229 = vector.multi_reduction <add>, %224, %cst_116 [1] : vector<16x32xf32> to vector<16xf32>
    %230 = vector.shape_cast %229 : vector<16xf32> to vector<16x1xf32>
    %cst_117 = arith.constant 3.200000e+01 : f32
    %231 = vector.broadcast %cst_117 : f32 to vector<16x1xf32>
    %232 = arith.divf %230, %231 : vector<16x1xf32>
    %233 = vector.broadcast %232 : vector<16x1xf32> to vector<16x32xf32>
    %234 = arith.subf %224, %233 : vector<16x32xf32>
    %235 = arith.mulf %234, %234 : vector<16x32xf32>
    %cst_118 = arith.constant dense<0.000000e+00> : vector<16xf32>
    %236 = vector.multi_reduction <add>, %235, %cst_118 [1] : vector<16x32xf32> to vector<16xf32>
    %237 = vector.shape_cast %236 : vector<16xf32> to vector<16x1xf32>
    %cst_119 = arith.constant 3.200000e+01 : f32
    %238 = vector.broadcast %cst_119 : f32 to vector<16x1xf32>
    %239 = arith.divf %237, %238 : vector<16x1xf32>
    %240 = vector.broadcast %232 : vector<16x1xf32> to vector<16x32xf32>
    %241 = arith.subf %224, %240 : vector<16x32xf32>
    %cst_120 = arith.constant 9.99999974E-6 : f32
    %242 = vector.broadcast %cst_120 : f32 to vector<16x1xf32>
    %243 = arith.addf %239, %242 : vector<16x1xf32>
    %244 = math.rsqrt %243 : vector<16x1xf32>
    %245 = vector.broadcast %244 : vector<16x1xf32> to vector<16x32xf32>
    %246 = arith.mulf %241, %245 : vector<16x32xf32>
    %247 = vector.broadcast %226 : vector<1x32xf32> to vector<16x32xf32>
    %248 = arith.mulf %246, %247 : vector<16x32xf32>
    %249 = vector.broadcast %228 : vector<1x32xf32> to vector<16x32xf32>
    %250 = arith.addf %248, %249 : vector<16x32xf32>
    %c0_121 = arith.constant 0 : index
    %c0_122 = arith.constant 0 : index
    %251 = vector.load %arg5[%c0_121, %c0_122] : memref<8x16xf32, #tpu.memory_space<vmem>>, vector<8x16xf32>
    %cst_123 = arith.constant dense<0.000000e+00> : vector<8x32xf32>
    %252 = tpu.matmul %251, %250, %cst_123 {dimension_numbers = #tpu.dot_dimension_numbers<[1], [0], [0], [1], [0, 0, 1, 1], [], []>} : vector<8x16xf32>, vector<16x32xf32>, vector<8x32xf32> -> vector<8x32xf32>
    %253 = arith.truncf %252 : vector<8x32xf32> to vector<8x32xbf16>
    %c0_124 = arith.constant 0 : index
    %c0_125 = arith.constant 0 : index
    %254 = vector.load %arg18[%c0_124, %c0_125] : memref<32x128xbf16, #tpu.memory_space<vmem>>, vector<32x128xbf16>
    %cst_126 = arith.constant dense<0.000000e+00> : vector<8x128xf32>
    %255 = tpu.matmul %253, %254, %cst_126 {dimension_numbers = #tpu.dot_dimension_numbers<[1], [0], [0], [1], [0, 0, 1, 1], [], []>} : vector<8x32xbf16>, vector<32x128xbf16>, vector<8x128xf32> -> vector<8x128xf32>
    %c0_127 = arith.constant 0 : index
    %c0_128 = arith.constant 0 : index
    %256 = vector.load %arg19[%c0_127, %c0_128] : memref<1x128xf32, #tpu.memory_space<vmem>>, vector<1x128xf32>
    %257 = vector.broadcast %256 : vector<1x128xf32> to vector<8x128xf32>
    %258 = arith.addf %255, %257 : vector<8x128xf32>
    %c0_129 = arith.constant 0 : index
    %c0_130 = arith.constant 0 : index
    %259 = vector.load %arg20[%c0_129, %c0_130] : memref<8x128xf32, #tpu.memory_space<vmem>>, vector<8x128xf32>
    tpu.vector_store %arg20[%c0_129, %c0_130], %258 {strides = array<i32>} : memref<8x128xf32, #tpu.memory_space<vmem>>, vector<8x128xf32>,
    return
  }
}

</mosaic_0001>

<llo_original>
// kernel: transformer_forward.1
$region0: #{transformer_forward.1}
  #allocation0 [shape = 'u32[]', space=smem, size = 0x4, offset = 0x4, fixed_abs, tag = 'smem constant byte address 0x4 - core index']
  #allocation1 [shape = 'u32[144,128]{1,0:T(1,128)}', space=vmem, size = 0x12000, scoped, tag = 'internal scratch']
  %s0 = inlined_call_operand.vmem [shape: s32[16,1], index: 0, kind: input, shape index: {}]
  %s1 = inlined_call_operand.vmem [shape: bf16[64,32], index: 1, kind: input, shape index: {}]
  %s2 = inlined_call_operand.vmem [shape: f32[16,32], index: 2, kind: input, shape index: {}]
  %s3 = inlined_call_operand.vmem [shape: f32[16,16], index: 3, kind: input, shape index: {}]
  %s4 = inlined_call_operand.vmem [shape: f32[4,1,32], index: 4, kind: input, shape index: {}]
  %s5 = inlined_call_operand.vmem [shape: f32[8,16], index: 5, kind: input, shape index: {}]
  %s6 = inlined_call_operand.vmem [shape: bf16[2,32,96], index: 6, kind: input, shape index: {}]
  %s7 = inlined_call_operand.vmem [shape: f32[2,1,96], index: 7, kind: input, shape index: {}]
  %s8 = inlined_call_operand.vmem [shape: bf16[2,32,32], index: 8, kind: input, shape index: {}]
  %s9 = inlined_call_operand.vmem [shape: f32[2,1,32], index: 9, kind: input, shape index: {}]
  %s10 = inlined_call_operand.vmem [shape: bf16[2,32,64], index: 10, kind: input, shape index: {}]
  %s11 = inlined_call_operand.vmem [shape: f32[2,1,64], index: 11, kind: input, shape index: {}]
  %s12 = inlined_call_operand.vmem [shape: bf16[2,64,32], index: 12, kind: input, shape index: {}]
  %s13 = inlined_call_operand.vmem [shape: f32[2,1,32], index: 13, kind: input, shape index: {}]
  %s14 = inlined_call_operand.vmem [shape: f32[2,1,32], index: 14, kind: input, shape index: {}]
  %s15 = inlined_call_operand.vmem [shape: f32[2,1,32], index: 15, kind: input, shape index: {}]
  %s16 = inlined_call_operand.vmem [shape: f32[2,1,32], index: 16, kind: input, shape index: {}]
  %s17 = inlined_call_operand.vmem [shape: f32[2,1,32], index: 17, kind: input, shape index: {}]
  %s18 = inlined_call_operand.vmem [shape: bf16[32,128], index: 18, kind: input, shape index: {}]
  %s19 = inlined_call_operand.vmem [shape: f32[1,128], index: 19, kind: input, shape index: {}]
  %s20 = inlined_call_operand.vmem [shape: f32[8,128], index: 20, kind: output, shape index: {}]
  %s21 = sld [smem:[#allocation0]]
  $region90: #{transformer_forward.1} parent=0
    _
  %s23 = ssub.s32 1, %s21
  %s24 = scalar_select 0, %s23, %s21
  // Predicated region
  $region2: #{transformer_forward.1} parent=0 // pred_check
    _
  $region3: #{transformer_forward.1} parent=0 // pred_check_branch
    %26 = sbr.rel (0) target = $region5
  $region4: #{transformer_forward.1} parent=0 // pred_region
    _
  $region5: #{transformer_forward.1} parent=0 // pred_fallthru
    _
  // Predicated region
  $region6: #{transformer_forward.1} parent=0 // pred_check
    _
  $region7: #{transformer_forward.1} parent=0 // pred_check_branch
    %28 = sbr.rel (0) target = $region9
  $region8: #{transformer_forward.1} parent=0 // pred_region
    _
  $region9: #{transformer_forward.1} parent=0 // pred_fallthru
    _
  // Predicated region
  $region10: #{transformer_forward.1} parent=0 // pred_check
    _
  $region11: #{transformer_forward.1} parent=0 // pred_check_branch
    %30 = sbr.rel (0) target = $region13
  $region12: #{transformer_forward.1} parent=0 // pred_region
    _
  $region13: #{transformer_forward.1} parent=0 // pred_fallthru
    _
  // Predicated region
  $region14: #{transformer_forward.1} parent=0 // pred_check
    _
  $region15: #{transformer_forward.1} parent=0 // pred_check_branch
    %32 = sbr.rel (0) target = $region17
  $region16: #{transformer_forward.1} parent=0 // pred_region
    _
  $region17: #{transformer_forward.1} parent=0 // pred_fallthru
    _
  // Predicated region
  $region18: #{transformer_forward.1} parent=0 // pred_check
    _
  $region19: #{transformer_forward.1} parent=0 // pred_check_branch
    %34 = sbr.rel (0) target = $region21
  $region20: #{transformer_forward.1} parent=0 // pred_region
    _
  $region21: #{transformer_forward.1} parent=0 // pred_fallthru
    _
  // Predicated region
  $region22: #{transformer_forward.1} parent=0 // pred_check
    _
  $region23: #{transformer_forward.1} parent=0 // pred_check_branch
    %36 = sbr.rel (0) target = $region25
  $region24: #{transformer_forward.1} parent=0 // pred_region
    _
  $region25: #{transformer_forward.1} parent=0 // pred_fallthru
    _
  // Predicated region
  $region26: #{transformer_forward.1} parent=0 // pred_check
    _
  $region27: #{transformer_forward.1} parent=0 // pred_check_branch
    %38 = sbr.rel (0) target = $region29
  $region28: #{transformer_forward.1} parent=0 // pred_region
    _
  $region29: #{transformer_forward.1} parent=0 // pred_fallthru
    _
  // Predicated region
  $region30: #{transformer_forward.1} parent=0 // pred_check
    _
  $region31: #{transformer_forward.1} parent=0 // pred_check_branch
    %40 = sbr.rel (0) target = $region33
  $region32: #{transformer_forward.1} parent=0 // pred_region
    _
  $region33: #{transformer_forward.1} parent=0 // pred_fallthru
    _
  // Predicated region
  $region34: #{transformer_forward.1} parent=0 // pred_check
    _
  $region35: #{transformer_forward.1} parent=0 // pred_check_branch
    %42 = sbr.rel (0) target = $region37
  $region36: #{transformer_forward.1} parent=0 // pred_region
    _
  $region37: #{transformer_forward.1} parent=0 // pred_fallthru
    _
  // Predicated region
  $region38: #{transformer_forward.1} parent=0 // pred_check
    _
  $region39: #{transformer_forward.1} parent=0 // pred_check_branch
    %44 = sbr.rel (0) target = $region41
  $region40: #{transformer_forward.1} parent=0 // pred_region
    _
  $region41: #{transformer_forward.1} parent=0 // pred_fallthru
    _
  // Predicated region
  $region42: #{transformer_forward.1} parent=0 // pred_check
    _
  $region43: #{transformer_forward.1} parent=0 // pred_check_branch
    %46 = sbr.rel (0) target = $region45
  $region44: #{transformer_forward.1} parent=0 // pred_region
    _
  $region45: #{transformer_forward.1} parent=0 // pred_fallthru
    _
  // Predicated region
  $region46: #{transformer_forward.1} parent=0 // pred_check
    _
  $region47: #{transformer_forward.1} parent=0 // pred_check_branch
    %48 = sbr.rel (0) target = $region49
  $region48: #{transformer_forward.1} parent=0 // pred_region
    _
  $region49: #{transformer_forward.1} parent=0 // pred_fallthru
    _
  // Predicated region
  $region50: #{transformer_forward.1} parent=0 // pred_check
    _
  $region51: #{transformer_forward.1} parent=0 // pred_check_branch
    %50 = sbr.rel (0) target = $region53
  $region52: #{transformer_forward.1} parent=0 // pred_region
    _
  $region53: #{transformer_forward.1} parent=0 // pred_fallthru
    _
  // Predicated region
  $region54: #{transformer_forward.1} parent=0 // pred_check
    _
  $region55: #{transformer_forward.1} parent=0 // pred_check_branch
    %52 = sbr.rel (0) target = $region57
  $region56: #{transformer_forward.1} parent=0 // pred_region
    _
  $region57: #{transformer_forward.1} parent=0 // pred_fallthru
    _
  // Predicated region
  $region58: #{transformer_forward.1} parent=0 // pred_check
    _
  $region59: #{transformer_forward.1} parent=0 // pred_check_branch
    %54 = sbr.rel (0) target = $region61
  $region60: #{transformer_forward.1} parent=0 // pred_region
    _
  $region61: #{transformer_forward.1} parent=0 // pred_fallthru
    _
  // Predicated region
  $region62: #{transformer_forward.1} parent=0 // pred_check
    _
  $region63: #{transformer_forward.1} parent=0 // pred_check_branch
    %56 = sbr.rel (0) target = $region65
  $region64: #{transformer_forward.1} parent=0 // pred_region
    _
  $region65: #{transformer_forward.1} parent=0 // pred_fallthru
    _
  // Predicated region
  $region66: #{transformer_forward.1} parent=0 // pred_check
    _
  $region67: #{transformer_forward.1} parent=0 // pred_check_branch
    %58 = sbr.rel (0) target = $region69
  $region68: #{transformer_forward.1} parent=0 // pred_region
    _
  $region69: #{transformer_forward.1} parent=0 // pred_fallthru
    _
  // Predicated region
  $region70: #{transformer_forward.1} parent=0 // pred_check
    _
  $region71: #{transformer_forward.1} parent=0 // pred_check_branch
    %60 = sbr.rel (0) target = $region73
  $region72: #{transformer_forward.1} parent=0 // pred_region
    _
  $region73: #{transformer_forward.1} parent=0 // pred_fallthru
    _
  // Predicated region
  $region74: #{transformer_forward.1} parent=0 // pred_check
    _
  $region75: #{transformer_forward.1} parent=0 // pred_check_branch
    %62 = sbr.rel (0) target = $region77
  $region76: #{transformer_forward.1} parent=0 // pred_region
    _
  $region77: #{transformer_forward.1} parent=0 // pred_fallthru
    _
  // Predicated region
  $region78: #{transformer_forward.1} parent=0 // pred_check
    _
  $region79: #{transformer_forward.1} parent=0 // pred_check_branch
    %64 = sbr.rel (0) target = $region81
  $region80: #{transformer_forward.1} parent=0 // pred_region
    _
  $region81: #{transformer_forward.1} parent=0 // pred_fallthru
    _
  %v66 = vld [vmem:[%s0] sm:$0xff]
  %v67 = vld [vmem:[%s0 + $0x8] sm:$0xff]
  %v68 = vlaneseq
  %v69 = vand.u32 %v68, 127
  %70 = vset.pattern.permute.xlu0 0
  %71 = vperm.xlu0 %70, %v66
  %v72 = vpop.permute.xlu0 %71
  %73 = vset.pattern.permute.xlu0 0
  %74 = vperm.xlu0 %73, %v67
  %v75 = vpop.permute.xlu0 %74
  %vm76 = vcmp.eq.s32.totalorder %v69, %v72
  %vm77 = vcmp.eq.s32.totalorder %v69, %v75
  %v78 = vsel %vm76, 1, 0
  %v79 = vsel %vm77, 1, 0
  %v80 = vcvt.s32.f32 %v78
  %v81 = vcvt.s32.f32 %v79
  %v82 = vpack.c.bf16 %v81, %v80
  %v83 = vld [vmem:[%s1] sm:$0xf]
  %v84 = vld [vmem:[%s1 + $0x4] sm:$0xf]
  %v85 = vld [vmem:[%s1 + $0x8] sm:$0xf]
  %v86 = vld [vmem:[%s1 + $0xc] sm:$0xf]
  %v87 = vld [vmem:[%s1 + $0x10] sm:$0xf]
  %v88 = vld [vmem:[%s1 + $0x14] sm:$0xf]
  %v89 = vld [vmem:[%s1 + $0x18] sm:$0xf]
  %v90 = vld [vmem:[%s1 + $0x1c] sm:$0xf]
  %v91 = vld [vmem:[%s2] sm:$0xff]
  %v92 = vld [vmem:[%s2 + $0x8] sm:$0xff]
  %v101 = vunpack.c.l.b16 %v83
  %v102 = vunpack.c.l.b16 %v84
  %v103 = vunpack.c.l.b16 %v85
  %v104 = vunpack.c.l.b16 %v86
  %v105 = vunpack.c.l.b16 %v87
  %v106 = vunpack.c.l.b16 %v88
  %v107 = vunpack.c.l.b16 %v89
  %v108 = vunpack.c.l.b16 %v90
  %v109 = vpack.c.b16 %v102, %v101
  %v110 = vpack.c.b16 %v104, %v103
  %v111 = vpack.c.b16 %v106, %v105
  %v112 = vpack.c.b16 %v108, %v107
  %vm117 = vcmask 523264
  %v119 = vsel %vm117, %v82, 0
  %121 = vmatprep.subr.bf16.mxu0 0
  %122 = vmatpush1.bf16.msra.mxu0 %v109
  %123 = vmatprep.subr.bf16.mxu0 0
  %124 = vmatpush1.bf16.msra.mxu0 %v110
  %125 = vmatprep.subr.bf16.mxu0 0
  %126 = vmatpush1.bf16.msra.mxu0 %v111
  %127 = vmatprep.subr.bf16.mxu0 0
  %128 = vmatpush1.bf16.msra.mxu0 %v112
  %129 = vmatprep.subr.bf16.mxu0 0
  %130 = vmatpush1.bf16.msra.mxu0 0
  %131 = vmatprep.subr.bf16.mxu0 0
  %132 = vmatpush1.bf16.msra.mxu0 0
  %133 = vmatprep.subr.bf16.mxu0 0
  %134 = vmatpush1.bf16.msra.mxu0 0
  %135 = vmatprep.subr.bf16.mxu0 0
  %136 = vmatpush1.bf16.msra.mxu0 0
  %137 = vmatprep.subr.bf16.mxu0 0
  %138 = vmatpush1.bf16.msra.mxu0 0
  %139 = vmatprep.subr.bf16.mxu0 0
  %140 = vmatpush1.bf16.msra.mxu0 0
  %141 = vmatprep.subr.bf16.mxu0 0
  %142 = vmatpush1.bf16.msra.mxu0 0
  %143 = vmatprep.subr.bf16.mxu0 0
  %144 = vmatpush1.bf16.msra.mxu0 0
  %145 = vmatprep.subr.bf16.mxu0 0
  %146 = vmatpush1.bf16.msra.mxu0 0
  %147 = vmatprep.subr.bf16.mxu0 0
  %148 = vmatpush1.bf16.msra.mxu0 0
  %149 = vmatprep.subr.bf16.mxu0 0
  %150 = vmatpush1.bf16.msra.mxu0 0
  %151 = vmatprep.subr.bf16.mxu0 0
  %152 = vmatpush1.bf16.msra.mxu0 0
  %153 = vmatprep.mubr.bf16.mxu0 0
  %154 = vmatmul.mubr.bf16.gmra.mrb[0].mxu0 %v119
  %v155 = vpop.f32.mrb[0].mxu0
  %v156 = vadd.f32 %v91, %v155
  %v157 = vpop.f32.mrb[0].mxu0
  %v158 = vpop.f32.mrb[0].mxu0
  %v159 = vadd.f32 %v92, %v158
  %v160 = vpop.f32.mrb[0].mxu0
  %161 = vdwg.mxu0
  %v162 = vld [vmem:[%s3] sm:$0xff]
  %v163 = vld [vmem:[%s3 + $0x8] sm:$0xff]
  %v164 = vld [vmem:[%s4] sm:$0x1]
  %v165 = vld [vmem:[%s4 + $0x1] sm:$0x1]
  %v166 = vld [vmem:[%s4 + $0x2] sm:$0x1]
  %v167 = vld [vmem:[%s4 + $0x3] sm:$0x1]
  %v168 = vpack.c.bf16 %v159, %v156
  %v169 = vld [vmem:[%s6] sm:$0xf]
  %v170 = vld [vmem:[%s6 + $0x4] sm:$0xf]
  %v171 = vld [vmem:[%s6 + $0x8] sm:$0xf]
  %v172 = vld [vmem:[%s6 + $0xc] sm:$0xf]
  %v173 = vld [vmem:[%s7] sm:$0x1]
  %v175 = vlaneseq
  %v176 = vshrl.u32 %v175, 7
  %v177 = vsub.s32 0, %v176
  %v178 = vrot.slane %v173, %v177
  %v184 = vunpack.c.l.b16 %v169
  %v185 = vunpack.c.l.b16 %v170
  %v186 = vunpack.c.l.b16 %v171
  %v187 = vunpack.c.l.b16 %v172
  %v188 = vpack.c.b16 %v185, %v184
  %v189 = vpack.c.b16 %v187, %v186
  %vm192 = vcmask 261120
  %v194 = vsel %vm192, %v168, 0
  %196 = vmatprep.subr.bf16.mxu0 0
  %197 = vmatpush1.bf16.msra.mxu0 %v188
  %198 = vmatprep.subr.bf16.mxu0 0
  %199 = vmatpush1.bf16.msra.mxu0 %v189
  %200 = vmatprep.subr.bf16.mxu0 0
  %201 = vmatpush1.bf16.msra.mxu0 0
  %202 = vmatprep.subr.bf16.mxu0 0
  %203 = vmatpush1.bf16.msra.mxu0 0
  %204 = vmatprep.subr.bf16.mxu0 0
  %205 = vmatpush1.bf16.msra.mxu0 0
  %206 = vmatprep.subr.bf16.mxu0 0
  %207 = vmatpush1.bf16.msra.mxu0 0
  %208 = vmatprep.subr.bf16.mxu0 0
  %209 = vmatpush1.bf16.msra.mxu0 0
  %210 = vmatprep.subr.bf16.mxu0 0
  %211 = vmatpush1.bf16.msra.mxu0 0
  %212 = vmatprep.subr.bf16.mxu0 0
  %213 = vmatpush1.bf16.msra.mxu0 0
  %214 = vmatprep.subr.bf16.mxu0 0
  %215 = vmatpush1.bf16.msra.mxu0 0
  %216 = vmatprep.subr.bf16.mxu0 0
  %217 = vmatpush1.bf16.msra.mxu0 0
  %218 = vmatprep.subr.bf16.mxu0 0
  %219 = vmatpush1.bf16.msra.mxu0 0
  %220 = vmatprep.subr.bf16.mxu0 0
  %221 = vmatpush1.bf16.msra.mxu0 0
  %222 = vmatprep.subr.bf16.mxu0 0
  %223 = vmatpush1.bf16.msra.mxu0 0
  %224 = vmatprep.subr.bf16.mxu0 0
  %225 = vmatpush1.bf16.msra.mxu0 0
  %226 = vmatprep.subr.bf16.mxu0 0
  %227 = vmatpush1.bf16.msra.mxu0 0
  %228 = vmatprep.mubr.bf16.mxu0 0
  %229 = vmatmul.mubr.bf16.gmra.mrb[0].mxu0 %v194
  %v230 = vpop.f32.mrb[0].mxu0
  %v231 = vadd.f32 %v178, %v230
  %v232 = vpop.f32.mrb[0].mxu0
  %v233 = vpop.f32.mrb[0].mxu0
  %v234 = vadd.f32 %v178, %v233
  %v235 = vpop.f32.mrb[0].mxu0
  %236 = vdwg.mxu0
  %v241 = vlaneseq
  %v242 = vshrl.u32 %v241, 7
  %v243 = vsub.s32 0, %v242
  %v244 = vrot.slane %v164, %v243
  %v245 = vlaneseq
  %v246 = vshrl.u32 %v245, 7
  %v247 = vsub.s32 0, %v246
  %v248 = vrot.slane %v165, %v247
  %v249 = vlaneseq
  %v250 = vshrl.u32 %v249, 7
  %v251 = vsub.s32 0, %v250
  %v252 = vrot.slane %v166, %v251
  %v253 = vlaneseq
  %v254 = vshrl.u32 %v253, 7
  %v255 = vsub.s32 0, %v254
  %v256 = vrot.slane %v167, %v255
  %v261 = vmul.f32 %v231, %v244
  %v262 = vmul.f32 %v234, %v244
  %v263 = vmul.f32 %v231, %v248
  %v264 = vmul.f32 %v234, %v248
  %v265 = vmul.f32 %v231, %v252
  %v266 = vmul.f32 %v234, %v252
  %v267 = vmul.f32 %v231, %v256
  %v268 = vmul.f32 %v234, %v256
  %v269 = vpack.c.bf16 %v262, %v261
  %v270 = vpack.c.bf16 %v264, %v263
  %v271 = vpack.c.bf16 %v266, %v265
  %v272 = vpack.c.bf16 %v268, %v267
  %v273 = vpack.c.bf16 %v234, %v231
  %275 = vrot.lane.b32.xlu0 %v273, 96
  %v276 = vpop.permute.xlu0 %275
  %v278 = vsel %vm192, %v269, 0
  %v281 = vsel %vm192, %v270, 0
  %v284 = vsel %vm192, %v271, 0
  %v287 = vsel %vm192, %v272, 0
  %v290 = vsel %vm192, %v276, 0
  %292 = vmatprep.subr.bf16.mxu0 0
  %293 = vmatpush1.bf16.xpose.msra.mxu0 %v290
  %294 = vmatprep.subr.bf16.mxu0 0
  %295 = vmatpush1.bf16.xpose.msra.mxu0 0
  %296 = vmatprep.subr.bf16.mxu0 0
  %297 = vmatpush1.bf16.xpose.msra.mxu0 0
  %298 = vmatprep.subr.bf16.mxu0 0
  %299 = vmatpush1.bf16.xpose.msra.mxu0 0
  %300 = vmatprep.subr.bf16.mxu0 0
  %301 = vmatpush1.bf16.xpose.msra.mxu0 0
  %302 = vmatprep.subr.bf16.mxu0 0
  %303 = vmatpush1.bf16.xpose.msra.mxu0 0
  %304 = vmatprep.subr.bf16.mxu0 0
  %305 = vmatpush1.bf16.xpose.msra.mxu0 0
  %306 = vmatprep.subr.bf16.mxu0 0
  %307 = vmatpush1.bf16.xpose.msra.mxu0 0
  %308 = vmatprep.subr.bf16.mxu0 0
  %309 = vmatpush1.bf16.xpose.msra.mxu0 0
  %310 = vmatprep.subr.bf16.mxu0 0
  %311 = vmatpush1.bf16.xpose.msra.mxu0 0
  %312 = vmatprep.subr.bf16.mxu0 0
  %313 = vmatpush1.bf16.xpose.msra.mxu0 0
  %314 = vmatprep.subr.bf16.mxu0 0
  %315 = vmatpush1.bf16.xpose.msra.mxu0 0
  %316 = vmatprep.subr.bf16.mxu0 0
  %317 = vmatpush1.bf16.xpose.msra.mxu0 0
  %318 = vmatprep.subr.bf16.mxu0 0
  %319 = vmatpush1.bf16.xpose.msra.mxu0 0
  %320 = vmatprep.subr.bf16.mxu0 0
  %321 = vmatpush1.bf16.xpose.msra.mxu0 0
  %322 = vmatprep.subr.bf16.mxu0 0
  %323 = vmatpush1.bf16.xpose.msra.mxu0 0
  %324 = vmatprep.mubr.bf16.mxu0 0
  %325 = vmatmul.mubr.bf16.gmra.mrb[0].mxu0 %v278
  %v326 = vpop.f32.mrb[0].mxu0
  %v327 = vadd.f32 0.0, %v326
  %v328 = vpop.f32.mrb[0].mxu0
  %v329 = vpop.f32.mrb[0].mxu0
  %v330 = vadd.f32 0.0, %v329
  %v331 = vpop.f32.mrb[0].mxu0
  %332 = vmatprep.mubr.bf16.mxu0 0
  %333 = vmatmul.mubr.bf16.gmra.mrb[0].mxu0 %v281
  %v334 = vpop.f32.mrb[0].mxu0
  %v335 = vadd.f32 0.0, %v334
  %v336 = vpop.f32.mrb[0].mxu0
  %v337 = vpop.f32.mrb[0].mxu0
  %v338 = vadd.f32 0.0, %v337
  %v339 = vpop.f32.mrb[0].mxu0
  %340 = vmatprep.mubr.bf16.mxu0 0
  %341 = vmatmul.mubr.bf16.gmra.mrb[0].mxu0 %v284
  %v342 = vpop.f32.mrb[0].mxu0
  %v343 = vadd.f32 0.0, %v342
  %v344 = vpop.f32.mrb[0].mxu0
  %v345 = vpop.f32.mrb[0].mxu0
  %v346 = vadd.f32 0.0, %v345
  %v347 = vpop.f32.mrb[0].mxu0
  %348 = vmatprep.mubr.bf16.mxu0 0
  %349 = vmatmul.mubr.bf16.gmra.mrb[0].mxu0 %v287
  %v350 = vpop.f32.mrb[0].mxu0
  %v351 = vadd.f32 0.0, %v350
  %v352 = vpop.f32.mrb[0].mxu0
  %v353 = vpop.f32.mrb[0].mxu0
  %v354 = vadd.f32 0.0, %v353
  %v355 = vpop.f32.mrb[0].mxu0
  %356 = vdwg.mxu0
  %v357 = vmul.f32 %v327, 0.35355338
  %v358 = vmul.f32 %v330, 0.35355338
  %v359 = vmul.f32 %v335, 0.35355338
  %v360 = vmul.f32 %v338, 0.35355338
  %v361 = vmul.f32 %v343, 0.35355338
  %v362 = vmul.f32 %v346, 0.35355338
  %v363 = vmul.f32 %v351, 0.35355338
  %v364 = vmul.f32 %v354, 0.35355338
  %v365 = vadd.f32 %v357, %v162
  %v366 = vadd.f32 %v358, %v163
  %v367 = vadd.f32 %v359, %v162
  %v368 = vadd.f32 %v360, %v163
  %v369 = vadd.f32 %v361, %v162
  %v370 = vadd.f32 %v362, %v163
  %v371 = vadd.f32 %v363, %v162
  %v372 = vadd.f32 %v364, %v163
  %v373 = vmul.f32 %v365, 1.442695
  %v374 = vpow.pop %v373
  %v375 = vmul.f32 %v366, 1.442695
  %v376 = vpow.pop %v375
  %v377 = vmul.f32 %v367, 1.442695
  %v378 = vpow.pop %v377
  %v379 = vmul.f32 %v368, 1.442695
  %v380 = vpow.pop %v379
  %v381 = vmul.f32 %v369, 1.442695
  %v382 = vpow.pop %v381
  %v383 = vmul.f32 %v370, 1.442695
  %v384 = vpow.pop %v383
  %v385 = vmul.f32 %v371, 1.442695
  %v386 = vpow.pop %v385
  %v387 = vmul.f32 %v372, 1.442695
  %v388 = vpow.pop %v387
  %vm389 = vcmask 130048
  %v390 = vsel %vm389, %v374, 0.0
  %391 = vadd.xlane.f32.xlu0 %v390
  %v392 = vpop.xlane.xlu0 %391
  %v393 = vsel %vm389, %v376, 0.0
  %394 = vadd.xlane.f32.xlu0 %v393
  %v395 = vpop.xlane.xlu0 %394
  %v396 = vsel %vm389, %v378, 0.0
  %397 = vadd.xlane.f32.xlu0 %v396
  %v398 = vpop.xlane.xlu0 %397
  %v399 = vsel %vm389, %v380, 0.0
  %400 = vadd.xlane.f32.xlu0 %v399
  %v401 = vpop.xlane.xlu0 %400
  %v402 = vsel %vm389, %v382, 0.0
  %403 = vadd.xlane.f32.xlu0 %v402
  %v404 = vpop.xlane.xlu0 %403
  %v405 = vsel %vm389, %v384, 0.0
  %406 = vadd.xlane.f32.xlu0 %v405
  %v407 = vpop.xlane.xlu0 %406
  %v408 = vsel %vm389, %v386, 0.0
  %409 = vadd.xlane.f32.xlu0 %v408
  %v410 = vpop.xlane.xlu0 %409
  %v411 = vsel %vm389, %v388, 0.0
  %412 = vadd.xlane.f32.xlu0 %v411
  %v413 = vpop.xlane.xlu0 %412
  %v414 = vrcp.pop %v392
  %v415 = vrcp.pop %v395
  %v416 = vrcp.pop %v398
  %v417 = vrcp.pop %v401
  %v418 = vrcp.pop %v404
  %v419 = vrcp.pop %v407
  %v420 = vrcp.pop %v410
  %v421 = vrcp.pop %v413
  %v422 = vmul.f32 %v374, %v414
  %v423 = vmul.f32 %v376, %v415
  %v424 = vmul.f32 %v378, %v416
  %v425 = vmul.f32 %v380, %v417
  %v426 = vmul.f32 %v382, %v418
  %v427 = vmul.f32 %v384, %v419
  %v428 = vmul.f32 %v386, %v420
  %v429 = vmul.f32 %v388, %v421
  %v430 = vpack.c.bf16 %v423, %v422
  %v431 = vpack.c.bf16 %v425, %v424
  %v432 = vpack.c.bf16 %v427, %v426
  %v433 = vpack.c.bf16 %v429, %v428
  %434 = vrot.lane.b32.xlu0 %v273, 64
  %v435 = vpop.permute.xlu0 %434
  %v438 = vsel %vm389, %v430, 0
  %v441 = vsel %vm389, %v431, 0
  %v444 = vsel %vm389, %v432, 0
  %v447 = vsel %vm389, %v433, 0
  %449 = vmatprep.subr.bf16.mxu0 0
  %450 = vmatpush1.bf16.msra.mxu0 %v435
  %451 = vmatprep.subr.bf16.mxu0 0
  %452 = vmatpush1.bf16.msra.mxu0 0
  %453 = vmatprep.subr.bf16.mxu0 0
  %454 = vmatpush1.bf16.msra.mxu0 0
  %455 = vmatprep.subr.bf16.mxu0 0
  %456 = vmatpush1.bf16.msra.mxu0 0
  %457 = vmatprep.subr.bf16.mxu0 0
  %458 = vmatpush1.bf16.msra.mxu0 0
  %459 = vmatprep.subr.bf16.mxu0 0
  %460 = vmatpush1.bf16.msra.mxu0 0
  %461 = vmatprep.subr.bf16.mxu0 0
  %462 = vmatpush1.bf16.msra.mxu0 0
  %463 = vmatprep.subr.bf16.mxu0 0
  %464 = vmatpush1.bf16.msra.mxu0 0
  %465 = vmatprep.subr.bf16.mxu0 0
  %466 = vmatpush1.bf16.msra.mxu0 0
  %467 = vmatprep.subr.bf16.mxu0 0
  %468 = vmatpush1.bf16.msra.mxu0 0
  %469 = vmatprep.subr.bf16.mxu0 0
  %470 = vmatpush1.bf16.msra.mxu0 0
  %471 = vmatprep.subr.bf16.mxu0 0
  %472 = vmatpush1.bf16.msra.mxu0 0
  %473 = vmatprep.subr.bf16.mxu0 0
  %474 = vmatpush1.bf16.msra.mxu0 0
  %475 = vmatprep.subr.bf16.mxu0 0
  %476 = vmatpush1.bf16.msra.mxu0 0
  %477 = vmatprep.subr.bf16.mxu0 0
  %478 = vmatpush1.bf16.msra.mxu0 0
  %479 = vmatprep.subr.bf16.mxu0 0
  %480 = vmatpush1.bf16.msra.mxu0 0
  %481 = vmatprep.mubr.bf16.mxu0 0
  %482 = vmatmul.mubr.bf16.gmra.mrb[0].mxu0 %v438
  %v483 = vpop.f32.mrb[0].mxu0
  %v484 = vadd.f32 0.0, %v483
  %v485 = vpop.f32.mrb[0].mxu0
  %v486 = vpop.f32.mrb[0].mxu0
  %v487 = vadd.f32 0.0, %v486
  %v488 = vpop.f32.mrb[0].mxu0
  %489 = vmatprep.mubr.bf16.mxu0 0
  %490 = vmatmul.mubr.bf16.gmra.mrb[0].mxu0 %v441
  %v491 = vpop.f32.mrb[0].mxu0
  %v492 = vadd.f32 0.0, %v491
  %v493 = vpop.f32.mrb[0].mxu0
  %v494 = vpop.f32.mrb[0].mxu0
  %v495 = vadd.f32 0.0, %v494
  %v496 = vpop.f32.mrb[0].mxu0
  %497 = vmatprep.mubr.bf16.mxu0 0
  %498 = vmatmul.mubr.bf16.gmra.mrb[0].mxu0 %v444
  %v499 = vpop.f32.mrb[0].mxu0
  %v500 = vadd.f32 0.0, %v499
  %v501 = vpop.f32.mrb[0].mxu0
  %v502 = vpop.f32.mrb[0].mxu0
  %v503 = vadd.f32 0.0, %v502
  %v504 = vpop.f32.mrb[0].mxu0
  %505 = vmatprep.mubr.bf16.mxu0 0
  %506 = vmatmul.mubr.bf16.gmra.mrb[0].mxu0 %v447
  %v507 = vpop.f32.mrb[0].mxu0
  %v508 = vadd.f32 0.0, %v507
  %v509 = vpop.f32.mrb[0].mxu0
  %v510 = vpop.f32.mrb[0].mxu0
  %v511 = vadd.f32 0.0, %v510
  %v512 = vpop.f32.mrb[0].mxu0
  %513 = vdwg.mxu0
  %v514 = vmul.f32 %v484, %v244
  %v515 = vmul.f32 %v487, %v244
  %v516 = vmul.f32 %v492, %v248
  %v517 = vmul.f32 %v495, %v248
  %v518 = vmul.f32 %v500, %v252
  %v519 = vmul.f32 %v503, %v252
  %v520 = vmul.f32 %v508, %v256
  %v521 = vmul.f32 %v511, %v256
  %v522 = vsel %vm192, %v514, 0.0
  %v523 = vsel %vm192, %v516, 0.0
  %v524 = vadd.f32 %v522, %v523
  %v525 = vsel %vm192, %v518, 0.0
  %v526 = vadd.f32 %v524, %v525
  %v527 = vsel %vm192, %v520, 0.0
  %v528 = vadd.f32 %v526, %v527
  %v529 = vsel %vm192, %v515, 0.0
  %v530 = vsel %vm192, %v517, 0.0
  %v531 = vadd.f32 %v529, %v530
  %v532 = vsel %vm192, %v519, 0.0
  %v533 = vadd.f32 %v531, %v532
  %v534 = vsel %vm192, %v521, 0.0
  %v535 = vadd.f32 %v533, %v534
  %v536 = vpack.c.bf16 %v535, %v528
  %v537 = vld [vmem:[%s8] sm:$0xf]
  %v538 = vld [vmem:[%s8 + $0x4] sm:$0xf]
  %v539 = vld [vmem:[%s8 + $0x8] sm:$0xf]
  %v540 = vld [vmem:[%s8 + $0xc] sm:$0xf]
  %v541 = vld [vmem:[%s9] sm:$0x1]
  %v543 = vlaneseq
  %v544 = vshrl.u32 %v543, 7
  %v545 = vsub.s32 0, %v544
  %v546 = vrot.slane %v541, %v545
  %v552 = vunpack.c.l.b16 %v537
  %v553 = vunpack.c.l.b16 %v538
  %v554 = vunpack.c.l.b16 %v539
  %v555 = vunpack.c.l.b16 %v540
  %v556 = vpack.c.b16 %v553, %v552
  %v557 = vpack.c.b16 %v555, %v554
  %v561 = vsel %vm192, %v536, 0
  %563 = vmatprep.subr.bf16.mxu0 0
  %564 = vmatpush1.bf16.msra.mxu0 %v556
  %565 = vmatprep.subr.bf16.mxu0 0
  %566 = vmatpush1.bf16.msra.mxu0 %v557
  %567 = vmatprep.subr.bf16.mxu0 0
  %568 = vmatpush1.bf16.msra.mxu0 0
  %569 = vmatprep.subr.bf16.mxu0 0
  %570 = vmatpush1.bf16.msra.mxu0 0
  %571 = vmatprep.subr.bf16.mxu0 0
  %572 = vmatpush1.bf16.msra.mxu0 0
  %573 = vmatprep.subr.bf16.mxu0 0
  %574 = vmatpush1.bf16.msra.mxu0 0
  %575 = vmatprep.subr.bf16.mxu0 0
  %576 = vmatpush1.bf16.msra.mxu0 0
  %577 = vmatprep.subr.bf16.mxu0 0
  %578 = vmatpush1.bf16.msra.mxu0 0
  %579 = vmatprep.subr.bf16.mxu0 0
  %580 = vmatpush1.bf16.msra.mxu0 0
  %581 = vmatprep.subr.bf16.mxu0 0
  %582 = vmatpush1.bf16.msra.mxu0 0
  %583 = vmatprep.subr.bf16.mxu0 0
  %584 = vmatpush1.bf16.msra.mxu0 0
  %585 = vmatprep.subr.bf16.mxu0 0
  %586 = vmatpush1.bf16.msra.mxu0 0
  %587 = vmatprep.subr.bf16.mxu0 0
  %588 = vmatpush1.bf16.msra.mxu0 0
  %589 = vmatprep.subr.bf16.mxu0 0
  %590 = vmatpush1.bf16.msra.mxu0 0
  %591 = vmatprep.subr.bf16.mxu0 0
  %592 = vmatpush1.bf16.msra.mxu0 0
  %593 = vmatprep.subr.bf16.mxu0 0
  %594 = vmatpush1.bf16.msra.mxu0 0
  %595 = vmatprep.mubr.bf16.mxu0 0
  %596 = vmatmul.mubr.bf16.gmra.mrb[0].mxu0 %v561
  %v597 = vpop.f32.mrb[0].mxu0
  %v598 = vadd.f32 %v546, %v597
  %v599 = vpop.f32.mrb[0].mxu0
  %v600 = vpop.f32.mrb[0].mxu0
  %v601 = vadd.f32 %v546, %v600
  %v602 = vpop.f32.mrb[0].mxu0
  %603 = vdwg.mxu0
  %v604 = vadd.f32 %v156, %v598
  %v605 = vadd.f32 %v159, %v601
  %v606 = vld [vmem:[%s14] sm:$0x1]
  %v607 = vld [vmem:[%s15] sm:$0x1]
  %v608 = vsel %vm192, %v604, 0.0
  %609 = vadd.xlane.f32.xlu0 %v608
  %v610 = vpop.xlane.xlu0 %609
  %v611 = vsel %vm192, %v605, 0.0
  %612 = vadd.xlane.f32.xlu0 %v611
  %v613 = vpop.xlane.xlu0 %612
  %v614 = vrcp.pop 32.0
  %v615 = vmul.f32 %v610, %v614
  %v616 = vmul.f32 %v613, %v614
  %v617 = vsub.f32 %v604, %v615
  %v618 = vsub.f32 %v605, %v616
  %v619 = vmul.f32 %v617, %v617
  %v620 = vmul.f32 %v618, %v618
  %v621 = vsel %vm192, %v619, 0.0
  %622 = vadd.xlane.f32.xlu0 %v621
  %v623 = vpop.xlane.xlu0 %622
  %v624 = vsel %vm192, %v620, 0.0
  %625 = vadd.xlane.f32.xlu0 %v624
  %v626 = vpop.xlane.xlu0 %625
  %v627 = vmul.f32 %v623, %v614
  %v628 = vmul.f32 %v626, %v614
  %v629 = vadd.f32 %v627, 1e-05
  %v630 = vadd.f32 %v628, 1e-05
  %v631 = vrsqrt.pop %v629
  %v632 = vrsqrt.pop %v630
  %v633 = vmul.f32 %v617, %v631
  %v634 = vmul.f32 %v618, %v632
  %v636 = vlaneseq
  %v637 = vshrl.u32 %v636, 7
  %v638 = vsub.s32 0, %v637
  %v639 = vrot.slane %v606, %v638
  %v641 = vmul.f32 %v633, %v639
  %v642 = vmul.f32 %v634, %v639
  %v644 = vlaneseq
  %v645 = vshrl.u32 %v644, 7
  %v646 = vsub.s32 0, %v645
  %v647 = vrot.slane %v607, %v646
  %v649 = vadd.f32 %v641, %v647
  %v650 = vadd.f32 %v642, %v647
  %v651 = vpack.c.bf16 %v650, %v649
  %v652 = vld [vmem:[%s10] sm:$0xf]
  %v653 = vld [vmem:[%s10 + $0x4] sm:$0xf]
  %v654 = vld [vmem:[%s10 + $0x8] sm:$0xf]
  %v655 = vld [vmem:[%s10 + $0xc] sm:$0xf]
  %v656 = vld [vmem:[%s11] sm:$0x1]
  %v658 = vlaneseq
  %v659 = vshrl.u32 %v658, 7
  %v660 = vsub.s32 0, %v659
  %v661 = vrot.slane %v656, %v660
  %v667 = vunpack.c.l.b16 %v652
  %v668 = vunpack.c.l.b16 %v653
  %v669 = vunpack.c.l.b16 %v654
  %v670 = vunpack.c.l.b16 %v655
  %v671 = vpack.c.b16 %v668, %v667
  %v672 = vpack.c.b16 %v670, %v669
  %v676 = vsel %vm192, %v651, 0
  %678 = vmatprep.subr.bf16.mxu0 0
  %679 = vmatpush1.bf16.msra.mxu0 %v671
  %680 = vmatprep.subr.bf16.mxu0 0
  %681 = vmatpush1.bf16.msra.mxu0 %v672
  %682 = vmatprep.subr.bf16.mxu0 0
  %683 = vmatpush1.bf16.msra.mxu0 0
  %684 = vmatprep.subr.bf16.mxu0 0
  %685 = vmatpush1.bf16.msra.mxu0 0
  %686 = vmatprep.subr.bf16.mxu0 0
  %687 = vmatpush1.bf16.msra.mxu0 0
  %688 = vmatprep.subr.bf16.mxu0 0
  %689 = vmatpush1.bf16.msra.mxu0 0
  %690 = vmatprep.subr.bf16.mxu0 0
  %691 = vmatpush1.bf16.msra.mxu0 0
  %692 = vmatprep.subr.bf16.mxu0 0
  %693 = vmatpush1.bf16.msra.mxu0 0
  %694 = vmatprep.subr.bf16.mxu0 0
  %695 = vmatpush1.bf16.msra.mxu0 0
  %696 = vmatprep.subr.bf16.mxu0 0
  %697 = vmatpush1.bf16.msra.mxu0 0
  %698 = vmatprep.subr.bf16.mxu0 0
  %699 = vmatpush1.bf16.msra.mxu0 0
  %700 = vmatprep.subr.bf16.mxu0 0
  %701 = vmatpush1.bf16.msra.mxu0 0
  %702 = vmatprep.subr.bf16.mxu0 0
  %703 = vmatpush1.bf16.msra.mxu0 0
  %704 = vmatprep.subr.bf16.mxu0 0
  %705 = vmatpush1.bf16.msra.mxu0 0
  %706 = vmatprep.subr.bf16.mxu0 0
  %707 = vmatpush1.bf16.msra.mxu0 0
  %708 = vmatprep.subr.bf16.mxu0 0
  %709 = vmatpush1.bf16.msra.mxu0 0
  %710 = vmatprep.mubr.bf16.mxu0 0
  %711 = vmatmul.mubr.bf16.gmra.mrb[0].mxu0 %v676
  %v712 = vpop.f32.mrb[0].mxu0
  %v713 = vadd.f32 %v661, %v712
  %v714 = vpop.f32.mrb[0].mxu0
  %v715 = vpop.f32.mrb[0].mxu0
  %v716 = vadd.f32 %v661, %v715
  %v717 = vpop.f32.mrb[0].mxu0
  %718 = vdwg.mxu0
  %v719 = vmax.f32 %v713, 0.0
  %v720 = vmax.f32 %v716, 0.0
  %v721 = vpack.c.bf16 %v720, %v719
  %v722 = vld [vmem:[%s12] sm:$0xf]
  %v723 = vld [vmem:[%s12 + $0x4] sm:$0xf]
  %v724 = vld [vmem:[%s12 + $0x8] sm:$0xf]
  %v725 = vld [vmem:[%s12 + $0xc] sm:$0xf]
  %v726 = vld [vmem:[%s12 + $0x10] sm:$0xf]
  %v727 = vld [vmem:[%s12 + $0x14] sm:$0xf]
  %v728 = vld [vmem:[%s12 + $0x18] sm:$0xf]
  %v729 = vld [vmem:[%s12 + $0x1c] sm:$0xf]
  %v730 = vld [vmem:[%s13] sm:$0x1]
  %v732 = vlaneseq
  %v733 = vshrl.u32 %v732, 7
  %v734 = vsub.s32 0, %v733
  %v735 = vrot.slane %v730, %v734
  %v745 = vunpack.c.l.b16 %v722
  %v746 = vunpack.c.l.b16 %v723
  %v747 = vunpack.c.l.b16 %v724
  %v748 = vunpack.c.l.b16 %v725
  %v749 = vunpack.c.l.b16 %v726
  %v750 = vunpack.c.l.b16 %v727
  %v751 = vunpack.c.l.b16 %v728
  %v752 = vunpack.c.l.b16 %v729
  %v753 = vpack.c.b16 %v746, %v745
  %v754 = vpack.c.b16 %v748, %v747
  %v755 = vpack.c.b16 %v750, %v749
  %v756 = vpack.c.b16 %v752, %v751
  %v762 = vsel %vm117, %v721, 0
  %764 = vmatprep.subr.bf16.mxu0 0
  %765 = vmatpush1.bf16.msra.mxu0 %v753
  %766 = vmatprep.subr.bf16.mxu0 0
  %767 = vmatpush1.bf16.msra.mxu0 %v754
  %768 = vmatprep.subr.bf16.mxu0 0
  %769 = vmatpush1.bf16.msra.mxu0 %v755
  %770 = vmatprep.subr.bf16.mxu0 0
  %771 = vmatpush1.bf16.msra.mxu0 %v756
  %772 = vmatprep.subr.bf16.mxu0 0
  %773 = vmatpush1.bf16.msra.mxu0 0
  %774 = vmatprep.subr.bf16.mxu0 0
  %775 = vmatpush1.bf16.msra.mxu0 0
  %776 = vmatprep.subr.bf16.mxu0 0
  %777 = vmatpush1.bf16.msra.mxu0 0
  %778 = vmatprep.subr.bf16.mxu0 0
  %779 = vmatpush1.bf16.msra.mxu0 0
  %780 = vmatprep.subr.bf16.mxu0 0
  %781 = vmatpush1.bf16.msra.mxu0 0
  %782 = vmatprep.subr.bf16.mxu0 0
  %783 = vmatpush1.bf16.msra.mxu0 0
  %784 = vmatprep.subr.bf16.mxu0 0
  %785 = vmatpush1.bf16.msra.mxu0 0
  %786 = vmatprep.subr.bf16.mxu0 0
  %787 = vmatpush1.bf16.msra.mxu0 0
  %788 = vmatprep.subr.bf16.mxu0 0
  %789 = vmatpush1.bf16.msra.mxu0 0
  %790 = vmatprep.subr.bf16.mxu0 0
  %791 = vmatpush1.bf16.msra.mxu0 0
  %792 = vmatprep.subr.bf16.mxu0 0
  %793 = vmatpush1.bf16.msra.mxu0 0
  %794 = vmatprep.subr.bf16.mxu0 0
  %795 = vmatpush1.bf16.msra.mxu0 0
  %796 = vmatprep.mubr.bf16.mxu0 0
  %797 = vmatmul.mubr.bf16.gmra.mrb[0].mxu0 %v762
  %v798 = vpop.f32.mrb[0].mxu0
  %v799 = vadd.f32 %v735, %v798
  %v800 = vpop.f32.mrb[0].mxu0
  %v801 = vpop.f32.mrb[0].mxu0
  %v802 = vadd.f32 %v735, %v801
  %v803 = vpop.f32.mrb[0].mxu0
  %804 = vdwg.mxu0
  %v805 = vadd.f32 %v649, %v799
  %v806 = vadd.f32 %v650, %v802
  %v807 = vld [vmem:[%s16] sm:$0x1]
  %v808 = vld [vmem:[%s17] sm:$0x1]
  %v809 = vsel %vm192, %v805, 0.0
  %810 = vadd.xlane.f32.xlu0 %v809
  %v811 = vpop.xlane.xlu0 %810
  %v812 = vsel %vm192, %v806, 0.0
  %813 = vadd.xlane.f32.xlu0 %v812
  %v814 = vpop.xlane.xlu0 %813
  %v815 = vmul.f32 %v811, %v614
  %v816 = vmul.f32 %v814, %v614
  %v817 = vsub.f32 %v805, %v815
  %v818 = vsub.f32 %v806, %v816
  %v819 = vmul.f32 %v817, %v817
  %v820 = vmul.f32 %v818, %v818
  %v821 = vsel %vm192, %v819, 0.0
  %822 = vadd.xlane.f32.xlu0 %v821
  %v823 = vpop.xlane.xlu0 %822
  %v824 = vsel %vm192, %v820, 0.0
  %825 = vadd.xlane.f32.xlu0 %v824
  %v826 = vpop.xlane.xlu0 %825
  %v827 = vmul.f32 %v823, %v614
  %v828 = vmul.f32 %v826, %v614
  %v829 = vadd.f32 %v827, 1e-05
  %v830 = vadd.f32 %v828, 1e-05
  %v831 = vrsqrt.pop %v829
  %v832 = vrsqrt.pop %v830
  %v833 = vmul.f32 %v817, %v831
  %v834 = vmul.f32 %v818, %v832
  %v836 = vlaneseq
  %v837 = vshrl.u32 %v836, 7
  %v838 = vsub.s32 0, %v837
  %v839 = vrot.slane %v807, %v838
  %v841 = vmul.f32 %v833, %v839
  %v842 = vmul.f32 %v834, %v839
  %v844 = vlaneseq
  %v845 = vshrl.u32 %v844, 7
  %v846 = vsub.s32 0, %v845
  %v847 = vrot.slane %v808, %v846
  %v849 = vadd.f32 %v841, %v847
  %v850 = vadd.f32 %v842, %v847
  %v851 = vpack.c.bf16 %v850, %v849
  %s852 = scalar_lea.vmem %s6, 16
  %v853 = vld [vmem:[%s852] sm:$0xf]
  %v854 = vld [vmem:[%s852 + $0x4] sm:$0xf]
  %v855 = vld [vmem:[%s852 + $0x8] sm:$0xf]
  %v856 = vld [vmem:[%s852 + $0xc] sm:$0xf]
  %s857 = scalar_lea.vmem %s7, 1
  %v858 = vld [vmem:[%s857] sm:$0x1]
  %v860 = vlaneseq
  %v861 = vshrl.u32 %v860, 7
  %v862 = vsub.s32 0, %v861
  %v863 = vrot.slane %v858, %v862
  %v869 = vunpack.c.l.b16 %v853
  %v870 = vunpack.c.l.b16 %v854
  %v871 = vunpack.c.l.b16 %v855
  %v872 = vunpack.c.l.b16 %v856
  %v873 = vpack.c.b16 %v870, %v869
  %v874 = vpack.c.b16 %v872, %v871
  %v878 = vsel %vm192, %v851, 0
  %880 = vmatprep.subr.bf16.mxu0 0
  %881 = vmatpush1.bf16.msra.mxu0 %v873
  %882 = vmatprep.subr.bf16.mxu0 0
  %883 = vmatpush1.bf16.msra.mxu0 %v874
  %884 = vmatprep.subr.bf16.mxu0 0
  %885 = vmatpush1.bf16.msra.mxu0 0
  %886 = vmatprep.subr.bf16.mxu0 0
  %887 = vmatpush1.bf16.msra.mxu0 0
  %888 = vmatprep.subr.bf16.mxu0 0
  %889 = vmatpush1.bf16.msra.mxu0 0
  %890 = vmatprep.subr.bf16.mxu0 0
  %891 = vmatpush1.bf16.msra.mxu0 0
  %892 = vmatprep.subr.bf16.mxu0 0
  %893 = vmatpush1.bf16.msra.mxu0 0
  %894 = vmatprep.subr.bf16.mxu0 0
  %895 = vmatpush1.bf16.msra.mxu0 0
  %896 = vmatprep.subr.bf16.mxu0 0
  %897 = vmatpush1.bf16.msra.mxu0 0
  %898 = vmatprep.subr.bf16.mxu0 0
  %899 = vmatpush1.bf16.msra.mxu0 0
  %900 = vmatprep.subr.bf16.mxu0 0
  %901 = vmatpush1.bf16.msra.mxu0 0
  %902 = vmatprep.subr.bf16.mxu0 0
  %903 = vmatpush1.bf16.msra.mxu0 0
  %904 = vmatprep.subr.bf16.mxu0 0
  %905 = vmatpush1.bf16.msra.mxu0 0
  %906 = vmatprep.subr.bf16.mxu0 0
  %907 = vmatpush1.bf16.msra.mxu0 0
  %908 = vmatprep.subr.bf16.mxu0 0
  %909 = vmatpush1.bf16.msra.mxu0 0
  %910 = vmatprep.subr.bf16.mxu0 0
  %911 = vmatpush1.bf16.msra.mxu0 0
  %912 = vmatprep.mubr.bf16.mxu0 0
  %913 = vmatmul.mubr.bf16.gmra.mrb[0].mxu0 %v878
  %v914 = vpop.f32.mrb[0].mxu0
  %v915 = vadd.f32 %v863, %v914
  %v916 = vpop.f32.mrb[0].mxu0
  %v917 = vpop.f32.mrb[0].mxu0
  %v918 = vadd.f32 %v863, %v917
  %v919 = vpop.f32.mrb[0].mxu0
  %920 = vdwg.mxu0
  %v921 = vmul.f32 %v915, %v244
  %v922 = vmul.f32 %v918, %v244
  %v923 = vmul.f32 %v915, %v248
  %v924 = vmul.f32 %v918, %v248
  %v925 = vmul.f32 %v915, %v252
  %v926 = vmul.f32 %v918, %v252
  %v927 = vmul.f32 %v915, %v256
  %v928 = vmul.f32 %v918, %v256
  %v929 = vpack.c.bf16 %v922, %v921
  %v930 = vpack.c.bf16 %v924, %v923
  %v931 = vpack.c.bf16 %v926, %v925
  %v932 = vpack.c.bf16 %v928, %v927
  %v933 = vpack.c.bf16 %v918, %v915
  %935 = vrot.lane.b32.xlu0 %v933, 96
  %v936 = vpop.permute.xlu0 %935
  %v938 = vsel %vm192, %v929, 0
  %v941 = vsel %vm192, %v930, 0
  %v944 = vsel %vm192, %v931, 0
  %v947 = vsel %vm192, %v932, 0
  %v950 = vsel %vm192, %v936, 0
  %952 = vmatprep.subr.bf16.mxu0 0
  %953 = vmatpush1.bf16.xpose.msra.mxu0 %v950
  %954 = vmatprep.subr.bf16.mxu0 0
  %955 = vmatpush1.bf16.xpose.msra.mxu0 0
  %956 = vmatprep.subr.bf16.mxu0 0
  %957 = vmatpush1.bf16.xpose.msra.mxu0 0
  %958 = vmatprep.subr.bf16.mxu0 0
  %959 = vmatpush1.bf16.xpose.msra.mxu0 0
  %960 = vmatprep.subr.bf16.mxu0 0
  %961 = vmatpush1.bf16.xpose.msra.mxu0 0
  %962 = vmatprep.subr.bf16.mxu0 0
  %963 = vmatpush1.bf16.xpose.msra.mxu0 0
  %964 = vmatprep.subr.bf16.mxu0 0
  %965 = vmatpush1.bf16.xpose.msra.mxu0 0
  %966 = vmatprep.subr.bf16.mxu0 0
  %967 = vmatpush1.bf16.xpose.msra.mxu0 0
  %968 = vmatprep.subr.bf16.mxu0 0
  %969 = vmatpush1.bf16.xpose.msra.mxu0 0
  %970 = vmatprep.subr.bf16.mxu0 0
  %971 = vmatpush1.bf16.xpose.msra.mxu0 0
  %972 = vmatprep.subr.bf16.mxu0 0
  %973 = vmatpush1.bf16.xpose.msra.mxu0 0
  %974 = vmatprep.subr.bf16.mxu0 0
  %975 = vmatpush1.bf16.xpose.msra.mxu0 0
  %976 = vmatprep.subr.bf16.mxu0 0
  %977 = vmatpush1.bf16.xpose.msra.mxu0 0
  %978 = vmatprep.subr.bf16.mxu0 0
  %979 = vmatpush1.bf16.xpose.msra.mxu0 0
  %980 = vmatprep.subr.bf16.mxu0 0
  %981 = vmatpush1.bf16.xpose.msra.mxu0 0
  %982 = vmatprep.subr.bf16.mxu0 0
  %983 = vmatpush1.bf16.xpose.msra.mxu0 0
  %984 = vmatprep.mubr.bf16.mxu0 0
  %985 = vmatmul.mubr.bf16.gmra.mrb[0].mxu0 %v938
  %v986 = vpop.f32.mrb[0].mxu0
  %v987 = vadd.f32 0.0, %v986
  %v988 = vpop.f32.mrb[0].mxu0
  %v989 = vpop.f32.mrb[0].mxu0
  %v990 = vadd.f32 0.0, %v989
  %v991 = vpop.f32.mrb[0].mxu0
  %992 = vmatprep.mubr.bf16.mxu0 0
  %993 = vmatmul.mubr.bf16.gmra.mrb[0].mxu0 %v941
  %v994 = vpop.f32.mrb[0].mxu0
  %v995 = vadd.f32 0.0, %v994
  %v996 = vpop.f32.mrb[0].mxu0
  %v997 = vpop.f32.mrb[0].mxu0
  %v998 = vadd.f32 0.0, %v997
  %v999 = vpop.f32.mrb[0].mxu0
  %1000 = vmatprep.mubr.bf16.mxu0 0
  %1001 = vmatmul.mubr.bf16.gmra.mrb[0].mxu0 %v944
  %v1002 = vpop.f32.mrb[0].mxu0
  %v1003 = vadd.f32 0.0, %v1002
  %v1004 = vpop.f32.mrb[0].mxu0
  %v1005 = vpop.f32.mrb[0].mxu0
  %v1006 = vadd.f32 0.0, %v1005
  %v1007 = vpop.f32.mrb[0].mxu0
  %1008 = vmatprep.mubr.bf16.mxu0 0
  %1009 = vmatmul.mubr.bf16.gmra.mrb[0].mxu0 %v947
  %v1010 = vpop.f32.mrb[0].mxu0
  %v1011 = vadd.f32 0.0, %v1010
  %v1012 = vpop.f32.mrb[0].mxu0
  %v1013 = vpop.f32.mrb[0].mxu0
  %v1014 = vadd.f32 0.0, %v1013
  %v1015 = vpop.f32.mrb[0].mxu0
  %1016 = vdwg.mxu0
  %v1017 = vmul.f32 %v987, 0.35355338
  %v1018 = vmul.f32 %v990, 0.35355338
  %v1019 = vmul.f32 %v995, 0.35355338
  %v1020 = vmul.f32 %v998, 0.35355338
  %v1021 = vmul.f32 %v1003, 0.35355338
  %v1022 = vmul.f32 %v1006, 0.35355338
  %v1023 = vmul.f32 %v1011, 0.35355338
  %v1024 = vmul.f32 %v1014, 0.35355338
  %v1025 = vadd.f32 %v1017, %v162
  %v1026 = vadd.f32 %v1018, %v163
  %v1027 = vadd.f32 %v1019, %v162
  %v1028 = vadd.f32 %v1020, %v163
  %v1029 = vadd.f32 %v1021, %v162
  %v1030 = vadd.f32 %v1022, %v163
  %v1031 = vadd.f32 %v1023, %v162
  %v1032 = vadd.f32 %v1024, %v163
  %v1033 = vmul.f32 %v1025, 1.442695
  %v1034 = vpow.pop %v1033
  %v1035 = vmul.f32 %v1026, 1.442695
  %v1036 = vpow.pop %v1035
  %v1037 = vmul.f32 %v1027, 1.442695
  %v1038 = vpow.pop %v1037
  %v1039 = vmul.f32 %v1028, 1.442695
  %v1040 = vpow.pop %v1039
  %v1041 = vmul.f32 %v1029, 1.442695
  %v1042 = vpow.pop %v1041
  %v1043 = vmul.f32 %v1030, 1.442695
  %v1044 = vpow.pop %v1043
  %v1045 = vmul.f32 %v1031, 1.442695
  %v1046 = vpow.pop %v1045
  %v1047 = vmul.f32 %v1032, 1.442695
  %v1048 = vpow.pop %v1047
  %v1049 = vsel %vm389, %v1034, 0.0
  %1050 = vadd.xlane.f32.xlu0 %v1049
  %v1051 = vpop.xlane.xlu0 %1050
  %v1052 = vsel %vm389, %v1036, 0.0
  %1053 = vadd.xlane.f32.xlu0 %v1052
  %v1054 = vpop.xlane.xlu0 %1053
  %v1055 = vsel %vm389, %v1038, 0.0
  %1056 = vadd.xlane.f32.xlu0 %v1055
  %v1057 = vpop.xlane.xlu0 %1056
  %v1058 = vsel %vm389, %v1040, 0.0
  %1059 = vadd.xlane.f32.xlu0 %v1058
  %v1060 = vpop.xlane.xlu0 %1059
  %v1061 = vsel %vm389, %v1042, 0.0
  %1062 = vadd.xlane.f32.xlu0 %v1061
  %v1063 = vpop.xlane.xlu0 %1062
  %v1064 = vsel %vm389, %v1044, 0.0
  %1065 = vadd.xlane.f32.xlu0 %v1064
  %v1066 = vpop.xlane.xlu0 %1065
  %v1067 = vsel %vm389, %v1046, 0.0
  %1068 = vadd.xlane.f32.xlu0 %v1067
  %v1069 = vpop.xlane.xlu0 %1068
  %v1070 = vsel %vm389, %v1048, 0.0
  %1071 = vadd.xlane.f32.xlu0 %v1070
  %v1072 = vpop.xlane.xlu0 %1071
  %v1073 = vrcp.pop %v1051
  %v1074 = vrcp.pop %v1054
  %v1075 = vrcp.pop %v1057
  %v1076 = vrcp.pop %v1060
  %v1077 = vrcp.pop %v1063
  %v1078 = vrcp.pop %v1066
  %v1079 = vrcp.pop %v1069
  %v1080 = vrcp.pop %v1072
  %v1081 = vmul.f32 %v1034, %v1073
  %v1082 = vmul.f32 %v1036, %v1074
  %v1083 = vmul.f32 %v1038, %v1075
  %v1084 = vmul.f32 %v1040, %v1076
  %v1085 = vmul.f32 %v1042, %v1077
  %v1086 = vmul.f32 %v1044, %v1078
  %v1087 = vmul.f32 %v1046, %v1079
  %v1088 = vmul.f32 %v1048, %v1080
  %v1089 = vpack.c.bf16 %v1082, %v1081
  %v1090 = vpack.c.bf16 %v1084, %v1083
  %v1091 = vpack.c.bf16 %v1086, %v1085
  %v1092 = vpack.c.bf16 %v1088, %v1087
  %1093 = vrot.lane.b32.xlu0 %v933, 64
  %v1094 = vpop.permute.xlu0 %1093
  %v1097 = vsel %vm389, %v1089, 0
  %v1100 = vsel %vm389, %v1090, 0
  %v1103 = vsel %vm389, %v1091, 0
  %v1106 = vsel %vm389, %v1092, 0
  %1108 = vmatprep.subr.bf16.mxu0 0
  %1109 = vmatpush1.bf16.msra.mxu0 %v1094
  %1110 = vmatprep.subr.bf16.mxu0 0
  %1111 = vmatpush1.bf16.msra.mxu0 0
  %1112 = vmatprep.subr.bf16.mxu0 0
  %1113 = vmatpush1.bf16.msra.mxu0 0
  %1114 = vmatprep.subr.bf16.mxu0 0
  %1115 = vmatpush1.bf16.msra.mxu0 0
  %1116 = vmatprep.subr.bf16.mxu0 0
  %1117 = vmatpush1.bf16.msra.mxu0 0
  %1118 = vmatprep.subr.bf16.mxu0 0
  %1119 = vmatpush1.bf16.msra.mxu0 0
  %1120 = vmatprep.subr.bf16.mxu0 0
  %1121 = vmatpush1.bf16.msra.mxu0 0
  %1122 = vmatprep.subr.bf16.mxu0 0
  %1123 = vmatpush1.bf16.msra.mxu0 0
  %1124 = vmatprep.subr.bf16.mxu0 0
  %1125 = vmatpush1.bf16.msra.mxu0 0
  %1126 = vmatprep.subr.bf16.mxu0 0
  %1127 = vmatpush1.bf16.msra.mxu0 0
  %1128 = vmatprep.subr.bf16.mxu0 0
  %1129 = vmatpush1.bf16.msra.mxu0 0
  %1130 = vmatprep.subr.bf16.mxu0 0
  %1131 = vmatpush1.bf16.msra.mxu0 0
  %1132 = vmatprep.subr.bf16.mxu0 0
  %1133 = vmatpush1.bf16.msra.mxu0 0
  %1134 = vmatprep.subr.bf16.mxu0 0
  %1135 = vmatpush1.bf16.msra.mxu0 0
  %1136 = vmatprep.subr.bf16.mxu0 0
  %1137 = vmatpush1.bf16.msra.mxu0 0
  %1138 = vmatprep.subr.bf16.mxu0 0
  %1139 = vmatpush1.bf16.msra.mxu0 0
  %1140 = vmatprep.mubr.bf16.mxu0 0
  %1141 = vmatmul.mubr.bf16.gmra.mrb[0].mxu0 %v1097
  %v1142 = vpop.f32.mrb[0].mxu0
  %v1143 = vadd.f32 0.0, %v1142
  %v1144 = vpop.f32.mrb[0].mxu0
  %v1145 = vpop.f32.mrb[0].mxu0
  %v1146 = vadd.f32 0.0, %v1145
  %v1147 = vpop.f32.mrb[0].mxu0
  %1148 = vmatprep.mubr.bf16.mxu0 0
  %1149 = vmatmul.mubr.bf16.gmra.mrb[0].mxu0 %v1100
  %v1150 = vpop.f32.mrb[0].mxu0
  %v1151 = vadd.f32 0.0, %v1150
  %v1152 = vpop.f32.mrb[0].mxu0
  %v1153 = vpop.f32.mrb[0].mxu0
  %v1154 = vadd.f32 0.0, %v1153
  %v1155 = vpop.f32.mrb[0].mxu0
  %1156 = vmatprep.mubr.bf16.mxu0 0
  %1157 = vmatmul.mubr.bf16.gmra.mrb[0].mxu0 %v1103
  %v1158 = vpop.f32.mrb[0].mxu0
  %v1159 = vadd.f32 0.0, %v1158
  %v1160 = vpop.f32.mrb[0].mxu0
  %v1161 = vpop.f32.mrb[0].mxu0
  %v1162 = vadd.f32 0.0, %v1161
  %v1163 = vpop.f32.mrb[0].mxu0
  %1164 = vmatprep.mubr.bf16.mxu0 0
  %1165 = vmatmul.mubr.bf16.gmra.mrb[0].mxu0 %v1106
  %v1166 = vpop.f32.mrb[0].mxu0
  %v1167 = vadd.f32 0.0, %v1166
  %v1168 = vpop.f32.mrb[0].mxu0
  %v1169 = vpop.f32.mrb[0].mxu0
  %v1170 = vadd.f32 0.0, %v1169
  %v1171 = vpop.f32.mrb[0].mxu0
  %1172 = vdwg.mxu0
  %v1173 = vmul.f32 %v1143, %v244
  %v1174 = vmul.f32 %v1146, %v244
  %v1175 = vmul.f32 %v1151, %v248
  %v1176 = vmul.f32 %v1154, %v248
  %v1177 = vmul.f32 %v1159, %v252
  %v1178 = vmul.f32 %v1162, %v252
  %v1179 = vmul.f32 %v1167, %v256
  %v1180 = vmul.f32 %v1170, %v256
  %v1181 = vsel %vm192, %v1173, 0.0
  %v1182 = vsel %vm192, %v1175, 0.0
  %v1183 = vadd.f32 %v1181, %v1182
  %v1184 = vsel %vm192, %v1177, 0.0
  %v1185 = vadd.f32 %v1183, %v1184
  %v1186 = vsel %vm192, %v1179, 0.0
  %v1187 = vadd.f32 %v1185, %v1186
  %v1188 = vsel %vm192, %v1174, 0.0
  %v1189 = vsel %vm192, %v1176, 0.0
  %v1190 = vadd.f32 %v1188, %v1189
  %v1191 = vsel %vm192, %v1178, 0.0
  %v1192 = vadd.f32 %v1190, %v1191
  %v1193 = vsel %vm192, %v1180, 0.0
  %v1194 = vadd.f32 %v1192, %v1193
  %v1195 = vpack.c.bf16 %v1194, %v1187
  %s1196 = scalar_lea.vmem %s8, 16
  %v1197 = vld [vmem:[%s1196] sm:$0xf]
  %v1198 = vld [vmem:[%s1196 + $0x4] sm:$0xf]
  %v1199 = vld [vmem:[%s1196 + $0x8] sm:$0xf]
  %v1200 = vld [vmem:[%s1196 + $0xc] sm:$0xf]
  %s1201 = scalar_lea.vmem %s9, 1
  %v1202 = vld [vmem:[%s1201] sm:$0x1]
  %v1204 = vlaneseq
  %v1205 = vshrl.u32 %v1204, 7
  %v1206 = vsub.s32 0, %v1205
  %v1207 = vrot.slane %v1202, %v1206
  %v1213 = vunpack.c.l.b16 %v1197
  %v1214 = vunpack.c.l.b16 %v1198
  %v1215 = vunpack.c.l.b16 %v1199
  %v1216 = vunpack.c.l.b16 %v1200
  %v1217 = vpack.c.b16 %v1214, %v1213
  %v1218 = vpack.c.b16 %v1216, %v1215
  %v1222 = vsel %vm192, %v1195, 0
  %1224 = vmatprep.subr.bf16.mxu0 0
  %1225 = vmatpush1.bf16.msra.mxu0 %v1217
  %1226 = vmatprep.subr.bf16.mxu0 0
  %1227 = vmatpush1.bf16.msra.mxu0 %v1218
  %1228 = vmatprep.subr.bf16.mxu0 0
  %1229 = vmatpush1.bf16.msra.mxu0 0
  %1230 = vmatprep.subr.bf16.mxu0 0
  %1231 = vmatpush1.bf16.msra.mxu0 0
  %1232 = vmatprep.subr.bf16.mxu0 0
  %1233 = vmatpush1.bf16.msra.mxu0 0
  %1234 = vmatprep.subr.bf16.mxu0 0
  %1235 = vmatpush1.bf16.msra.mxu0 0
  %1236 = vmatprep.subr.bf16.mxu0 0
  %1237 = vmatpush1.bf16.msra.mxu0 0
  %1238 = vmatprep.subr.bf16.mxu0 0
  %1239 = vmatpush1.bf16.msra.mxu0 0
  %1240 = vmatprep.subr.bf16.mxu0 0
  %1241 = vmatpush1.bf16.msra.mxu0 0
  %1242 = vmatprep.subr.bf16.mxu0 0
  %1243 = vmatpush1.bf16.msra.mxu0 0
  %1244 = vmatprep.subr.bf16.mxu0 0
  %1245 = vmatpush1.bf16.msra.mxu0 0
  %1246 = vmatprep.subr.bf16.mxu0 0
  %1247 = vmatpush1.bf16.msra.mxu0 0
  %1248 = vmatprep.subr.bf16.mxu0 0
  %1249 = vmatpush1.bf16.msra.mxu0 0
  %1250 = vmatprep.subr.bf16.mxu0 0
  %1251 = vmatpush1.bf16.msra.mxu0 0
  %1252 = vmatprep.subr.bf16.mxu0 0
  %1253 = vmatpush1.bf16.msra.mxu0 0
  %1254 = vmatprep.subr.bf16.mxu0 0
  %1255 = vmatpush1.bf16.msra.mxu0 0
  %1256 = vmatprep.mubr.bf16.mxu0 0
  %1257 = vmatmul.mubr.bf16.gmra.mrb[0].mxu0 %v1222
  %v1258 = vpop.f32.mrb[0].mxu0
  %v1259 = vadd.f32 %v1207, %v1258
  %v1260 = vpop.f32.mrb[0].mxu0
  %v1261 = vpop.f32.mrb[0].mxu0
  %v1262 = vadd.f32 %v1207, %v1261
  %v1263 = vpop.f32.mrb[0].mxu0
  %1264 = vdwg.mxu0
  %v1265 = vadd.f32 %v849, %v1259
  %v1266 = vadd.f32 %v850, %v1262
  %s1267 = scalar_lea.vmem %s14, 1
  %v1268 = vld [vmem:[%s1267] sm:$0x1]
  %s1269 = scalar_lea.vmem %s15, 1
  %v1270 = vld [vmem:[%s1269] sm:$0x1]
  %v1271 = vsel %vm192, %v1265, 0.0
  %1272 = vadd.xlane.f32.xlu0 %v1271
  %v1273 = vpop.xlane.xlu0 %1272
  %v1274 = vsel %vm192, %v1266, 0.0
  %1275 = vadd.xlane.f32.xlu0 %v1274
  %v1276 = vpop.xlane.xlu0 %1275
  %v1277 = vmul.f32 %v1273, %v614
  %v1278 = vmul.f32 %v1276, %v614
  %v1279 = vsub.f32 %v1265, %v1277
  %v1280 = vsub.f32 %v1266, %v1278
  %v1281 = vmul.f32 %v1279, %v1279
  %v1282 = vmul.f32 %v1280, %v1280
  %v1283 = vsel %vm192, %v1281, 0.0
  %1284 = vadd.xlane.f32.xlu0 %v1283
  %v1285 = vpop.xlane.xlu0 %1284
  %v1286 = vsel %vm192, %v1282, 0.0
  %1287 = vadd.xlane.f32.xlu0 %v1286
  %v1288 = vpop.xlane.xlu0 %1287
  %v1289 = vmul.f32 %v1285, %v614
  %v1290 = vmul.f32 %v1288, %v614
  %v1291 = vadd.f32 %v1289, 1e-05
  %v1292 = vadd.f32 %v1290, 1e-05
  %v1293 = vrsqrt.pop %v1291
  %v1294 = vrsqrt.pop %v1292
  %v1295 = vmul.f32 %v1279, %v1293
  %v1296 = vmul.f32 %v1280, %v1294
  %v1298 = vlaneseq
  %v1299 = vshrl.u32 %v1298, 7
  %v1300 = vsub.s32 0, %v1299
  %v1301 = vrot.slane %v1268, %v1300
  %v1303 = vmul.f32 %v1295, %v1301
  %v1304 = vmul.f32 %v1296, %v1301
  %v1306 = vlaneseq
  %v1307 = vshrl.u32 %v1306, 7
  %v1308 = vsub.s32 0, %v1307
  %v1309 = vrot.slane %v1270, %v1308
  %v1311 = vadd.f32 %v1303, %v1309
  %v1312 = vadd.f32 %v1304, %v1309
  %v1313 = vpack.c.bf16 %v1312, %v1311
  %s1314 = scalar_lea.vmem %s10, 16
  %v1315 = vld [vmem:[%s1314] sm:$0xf]
  %v1316 = vld [vmem:[%s1314 + $0x4] sm:$0xf]
  %v1317 = vld [vmem:[%s1314 + $0x8] sm:$0xf]
  %v1318 = vld [vmem:[%s1314 + $0xc] sm:$0xf]
  %s1319 = scalar_lea.vmem %s11, 1
  %v1320 = vld [vmem:[%s1319] sm:$0x1]
  %v1322 = vlaneseq
  %v1323 = vshrl.u32 %v1322, 7
  %v1324 = vsub.s32 0, %v1323
  %v1325 = vrot.slane %v1320, %v1324
  %v1331 = vunpack.c.l.b16 %v1315
  %v1332 = vunpack.c.l.b16 %v1316
  %v1333 = vunpack.c.l.b16 %v1317
  %v1334 = vunpack.c.l.b16 %v1318
  %v1335 = vpack.c.b16 %v1332, %v1331
  %v1336 = vpack.c.b16 %v1334, %v1333
  %v1340 = vsel %vm192, %v1313, 0
  %1342 = vmatprep.subr.bf16.mxu0 0
  %1343 = vmatpush1.bf16.msra.mxu0 %v1335
  %1344 = vmatprep.subr.bf16.mxu0 0
  %1345 = vmatpush1.bf16.msra.mxu0 %v1336
  %1346 = vmatprep.subr.bf16.mxu0 0
  %1347 = vmatpush1.bf16.msra.mxu0 0
  %1348 = vmatprep.subr.bf16.mxu0 0
  %1349 = vmatpush1.bf16.msra.mxu0 0
  %1350 = vmatprep.subr.bf16.mxu0 0
  %1351 = vmatpush1.bf16.msra.mxu0 0
  %1352 = vmatprep.subr.bf16.mxu0 0
  %1353 = vmatpush1.bf16.msra.mxu0 0
  %1354 = vmatprep.subr.bf16.mxu0 0
  %1355 = vmatpush1.bf16.msra.mxu0 0
  %1356 = vmatprep.subr.bf16.mxu0 0
  %1357 = vmatpush1.bf16.msra.mxu0 0
  %1358 = vmatprep.subr.bf16.mxu0 0
  %1359 = vmatpush1.bf16.msra.mxu0 0
  %1360 = vmatprep.subr.bf16.mxu0 0
  %1361 = vmatpush1.bf16.msra.mxu0 0
  %1362 = vmatprep.subr.bf16.mxu0 0
  %1363 = vmatpush1.bf16.msra.mxu0 0
  %1364 = vmatprep.subr.bf16.mxu0 0
  %1365 = vmatpush1.bf16.msra.mxu0 0
  %1366 = vmatprep.subr.bf16.mxu0 0
  %1367 = vmatpush1.bf16.msra.mxu0 0
  %1368 = vmatprep.subr.bf16.mxu0 0
  %1369 = vmatpush1.bf16.msra.mxu0 0
  %1370 = vmatprep.subr.bf16.mxu0 0
  %1371 = vmatpush1.bf16.msra.mxu0 0
  %1372 = vmatprep.subr.bf16.mxu0 0
  %1373 = vmatpush1.bf16.msra.mxu0 0
  %1374 = vmatprep.mubr.bf16.mxu0 0
  %1375 = vmatmul.mubr.bf16.gmra.mrb[0].mxu0 %v1340
  %v1376 = vpop.f32.mrb[0].mxu0
  %v1377 = vadd.f32 %v1325, %v1376
  %v1378 = vpop.f32.mrb[0].mxu0
  %v1379 = vpop.f32.mrb[0].mxu0
  %v1380 = vadd.f32 %v1325, %v1379
  %v1381 = vpop.f32.mrb[0].mxu0
  %1382 = vdwg.mxu0
  %v1383 = vmax.f32 %v1377, 0.0
  %v1384 = vmax.f32 %v1380, 0.0
  %v1385 = vpack.c.bf16 %v1384, %v1383
  %s1386 = scalar_lea.vmem %s12, 32
  %v1387 = vld [vmem:[%s1386] sm:$0xf]
  %v1388 = vld [vmem:[%s1386 + $0x4] sm:$0xf]
  %v1389 = vld [vmem:[%s1386 + $0x8] sm:$0xf]
  %v1390 = vld [vmem:[%s1386 + $0xc] sm:$0xf]
  %v1391 = vld [vmem:[%s1386 + $0x10] sm:$0xf]
  %v1392 = vld [vmem:[%s1386 + $0x14] sm:$0xf]
  %v1393 = vld [vmem:[%s1386 + $0x18] sm:$0xf]
  %v1394 = vld [vmem:[%s1386 + $0x1c] sm:$0xf]
  %s1395 = scalar_lea.vmem %s13, 1
  %v1396 = vld [vmem:[%s1395] sm:$0x1]
  %v1398 = vlaneseq
  %v1399 = vshrl.u32 %v1398, 7
  %v1400 = vsub.s32 0, %v1399
  %v1401 = vrot.slane %v1396, %v1400
  %v1411 = vunpack.c.l.b16 %v1387
  %v1412 = vunpack.c.l.b16 %v1388
  %v1413 = vunpack.c.l.b16 %v1389
  %v1414 = vunpack.c.l.b16 %v1390
  %v1415 = vunpack.c.l.b16 %v1391
  %v1416 = vunpack.c.l.b16 %v1392
  %v1417 = vunpack.c.l.b16 %v1393
  %v1418 = vunpack.c.l.b16 %v1394
  %v1419 = vpack.c.b16 %v1412, %v1411
  %v1420 = vpack.c.b16 %v1414, %v1413
  %v1421 = vpack.c.b16 %v1416, %v1415
  %v1422 = vpack.c.b16 %v1418, %v1417
  %v1428 = vsel %vm117, %v1385, 0
  %1430 = vmatprep.subr.bf16.mxu0 0
  %1431 = vmatpush1.bf16.msra.mxu0 %v1419
  %1432 = vmatprep.subr.bf16.mxu0 0
  %1433 = vmatpush1.bf16.msra.mxu0 %v1420
  %1434 = vmatprep.subr.bf16.mxu0 0
  %1435 = vmatpush1.bf16.msra.mxu0 %v1421
  %1436 = vmatprep.subr.bf16.mxu0 0
  %1437 = vmatpush1.bf16.msra.mxu0 %v1422
  %1438 = vmatprep.subr.bf16.mxu0 0
  %1439 = vmatpush1.bf16.msra.mxu0 0
  %1440 = vmatprep.subr.bf16.mxu0 0
  %1441 = vmatpush1.bf16.msra.mxu0 0
  %1442 = vmatprep.subr.bf16.mxu0 0
  %1443 = vmatpush1.bf16.msra.mxu0 0
  %1444 = vmatprep.subr.bf16.mxu0 0
  %1445 = vmatpush1.bf16.msra.mxu0 0
  %1446 = vmatprep.subr.bf16.mxu0 0
  %1447 = vmatpush1.bf16.msra.mxu0 0
  %1448 = vmatprep.subr.bf16.mxu0 0
  %1449 = vmatpush1.bf16.msra.mxu0 0
  %1450 = vmatprep.subr.bf16.mxu0 0
  %1451 = vmatpush1.bf16.msra.mxu0 0
  %1452 = vmatprep.subr.bf16.mxu0 0
  %1453 = vmatpush1.bf16.msra.mxu0 0
  %1454 = vmatprep.subr.bf16.mxu0 0
  %1455 = vmatpush1.bf16.msra.mxu0 0
  %1456 = vmatprep.subr.bf16.mxu0 0
  %1457 = vmatpush1.bf16.msra.mxu0 0
  %1458 = vmatprep.subr.bf16.mxu0 0
  %1459 = vmatpush1.bf16.msra.mxu0 0
  %1460 = vmatprep.subr.bf16.mxu0 0
  %1461 = vmatpush1.bf16.msra.mxu0 0
  %1462 = vmatprep.mubr.bf16.mxu0 0
  %1463 = vmatmul.mubr.bf16.gmra.mrb[0].mxu0 %v1428
  %v1464 = vpop.f32.mrb[0].mxu0
  %v1465 = vadd.f32 %v1401, %v1464
  %v1466 = vpop.f32.mrb[0].mxu0
  %v1467 = vpop.f32.mrb[0].mxu0
  %v1468 = vadd.f32 %v1401, %v1467
  %v1469 = vpop.f32.mrb[0].mxu0
  %1470 = vdwg.mxu0
  %v1471 = vadd.f32 %v1311, %v1465
  %v1472 = vadd.f32 %v1312, %v1468
  %s1473 = scalar_lea.vmem %s16, 1
  %v1474 = vld [vmem:[%s1473] sm:$0x1]
  %s1475 = scalar_lea.vmem %s17, 1
  %v1476 = vld [vmem:[%s1475] sm:$0x1]
  %v1477 = vsel %vm192, %v1471, 0.0
  %1478 = vadd.xlane.f32.xlu0 %v1477
  %v1479 = vpop.xlane.xlu0 %1478
  %v1480 = vsel %vm192, %v1472, 0.0
  %1481 = vadd.xlane.f32.xlu0 %v1480
  %v1482 = vpop.xlane.xlu0 %1481
  %v1483 = vmul.f32 %v1479, %v614
  %v1484 = vmul.f32 %v1482, %v614
  %v1485 = vsub.f32 %v1471, %v1483
  %v1486 = vsub.f32 %v1472, %v1484
  %v1487 = vmul.f32 %v1485, %v1485
  %v1488 = vmul.f32 %v1486, %v1486
  %v1489 = vsel %vm192, %v1487, 0.0
  %1490 = vadd.xlane.f32.xlu0 %v1489
  %v1491 = vpop.xlane.xlu0 %1490
  %v1492 = vsel %vm192, %v1488, 0.0
  %1493 = vadd.xlane.f32.xlu0 %v1492
  %v1494 = vpop.xlane.xlu0 %1493
  %v1495 = vmul.f32 %v1491, %v614
  %v1496 = vmul.f32 %v1494, %v614
  %v1497 = vadd.f32 %v1495, 1e-05
  %v1498 = vadd.f32 %v1496, 1e-05
  %v1499 = vrsqrt.pop %v1497
  %v1500 = vrsqrt.pop %v1498
  %v1501 = vmul.f32 %v1485, %v1499
  %v1502 = vmul.f32 %v1486, %v1500
  %v1504 = vlaneseq
  %v1505 = vshrl.u32 %v1504, 7
  %v1506 = vsub.s32 0, %v1505
  %v1507 = vrot.slane %v1474, %v1506
  %v1509 = vmul.f32 %v1501, %v1507
  %v1510 = vmul.f32 %v1502, %v1507
  %v1512 = vlaneseq
  %v1513 = vshrl.u32 %v1512, 7
  %v1514 = vsub.s32 0, %v1513
  %v1515 = vrot.slane %v1476, %v1514
  %v1517 = vadd.f32 %v1509, %v1515
  %v1518 = vadd.f32 %v1510, %v1515
  %v1519 = vld [vmem:[%s5] sm:$0xff]
  %v1521 = vsel %vm389, %v1519, 0
  %1523 = vmatprep.subr.mxu0 0.0
  %1524 = vmatpush1.msra.mxu0 %v1517
  %1525 = vmatprep.subr.mxu0 0.0
  %1526 = vmatpush1.msra.mxu0 %v1518
  %1527 = vmatprep.subr.mxu0 0.0
  %1528 = vmatpush1.msra.mxu0 0.0
  %1529 = vmatprep.subr.mxu0 0.0
  %1530 = vmatpush1.msra.mxu0 0.0
  %1531 = vmatprep.subr.mxu0 0.0
  %1532 = vmatpush1.msra.mxu0 0.0
  %1533 = vmatprep.subr.mxu0 0.0
  %1534 = vmatpush1.msra.mxu0 0.0
  %1535 = vmatprep.subr.mxu0 0.0
  %1536 = vmatpush1.msra.mxu0 0.0
  %1537 = vmatprep.subr.mxu0 0.0
  %1538 = vmatpush1.msra.mxu0 0.0
  %1539 = vmatprep.subr.mxu0 0.0
  %1540 = vmatpush1.msra.mxu0 0.0
  %1541 = vmatprep.subr.mxu0 0.0
  %1542 = vmatpush1.msra.mxu0 0.0
  %1543 = vmatprep.subr.mxu0 0.0
  %1544 = vmatpush1.msra.mxu0 0.0
  %1545 = vmatprep.subr.mxu0 0.0
  %1546 = vmatpush1.msra.mxu0 0.0
  %1547 = vmatprep.subr.mxu0 0.0
  %1548 = vmatpush1.msra.mxu0 0.0
  %1549 = vmatprep.subr.mxu0 0.0
  %1550 = vmatpush1.msra.mxu0 0.0
  %1551 = vmatprep.subr.mxu0 0.0
  %1552 = vmatpush1.msra.mxu0 0.0
  %1553 = vmatprep.subr.mxu0 0.0
  %1554 = vmatpush1.msra.mxu0 0.0
  %1555 = vmatprep.subr.mxu0 0.0
  %1556 = vmatpush1.msra.mxu0 0.0
  %1557 = vmatprep.subr.mxu0 0.0
  %1558 = vmatpush1.msra.mxu0 0.0
  %1559 = vmatprep.subr.mxu0 0.0
  %1560 = vmatpush1.msra.mxu0 0.0
  %1561 = vmatprep.subr.mxu0 0.0
  %1562 = vmatpush1.msra.mxu0 0.0
  %1563 = vmatprep.subr.mxu0 0.0
  %1564 = vmatpush1.msra.mxu0 0.0
  %1565 = vmatprep.subr.mxu0 0.0
  %1566 = vmatpush1.msra.mxu0 0.0
  %1567 = vmatprep.subr.mxu0 0.0
  %1568 = vmatpush1.msra.mxu0 0.0
  %1569 = vmatprep.subr.mxu0 0.0
  %1570 = vmatpush1.msra.mxu0 0.0
  %1571 = vmatprep.subr.mxu0 0.0
  %1572 = vmatpush1.msra.mxu0 0.0
  %1573 = vmatprep.subr.mxu0 0.0
  %1574 = vmatpush1.msra.mxu0 0.0
  %1575 = vmatprep.subr.mxu0 0.0
  %1576 = vmatpush1.msra.mxu0 0.0
  %1577 = vmatprep.subr.mxu0 0.0
  %1578 = vmatpush1.msra.mxu0 0.0
  %1579 = vmatprep.subr.mxu0 0.0
  %1580 = vmatpush1.msra.mxu0 0.0
  %1581 = vmatprep.subr.mxu0 0.0
  %1582 = vmatpush1.msra.mxu0 0.0
  %1583 = vmatprep.subr.mxu0 0.0
  %1584 = vmatpush1.msra.mxu0 0.0
  %1585 = vmatprep.subr.mxu0 0.0
  %1586 = vmatpush1.msra.mxu0 0.0
  %1587 = vmatprep.mubr.f32.mxu0 0.0
  %1588 = vmatmul.mubr.f32.gmra.mrb[0].mxu0 %v1521
  %v1589 = vpop.f32.mrb[0].mxu0
  %v1590 = vadd.f32 0.0, %v1589
  %v1591 = vpop.f32.mrb[0].mxu0
  %1592 = vdwg.mxu0
  %v1593 = vpack.c.bf16 %v1590, %v1590
  %v1594 = vld [vmem:[%s18] sm:$0xf]
  %v1595 = vld [vmem:[%s18 + $0x4] sm:$0xf]
  %v1596 = vld [vmem:[%s18 + $0x8] sm:$0xf]
  %v1597 = vld [vmem:[%s18 + $0xc] sm:$0xf]
  %v1598 = vld [vmem:[%s19] sm:$0x1]
  %v1600 = vlaneseq
  %v1601 = vshrl.u32 %v1600, 7
  %v1602 = vsub.s32 0, %v1601
  %v1603 = vrot.slane %v1598, %v1602
  %v1609 = vunpack.c.l.b16 %v1594
  %v1610 = vunpack.c.l.b16 %v1595
  %v1611 = vunpack.c.l.b16 %v1596
  %v1612 = vunpack.c.l.b16 %v1597
  %v1613 = vpack.c.b16 %v1610, %v1609
  %v1614 = vpack.c.b16 %v1612, %v1611
  %v1618 = vsel %vm192, %v1593, 0
  %1620 = vmatprep.subr.bf16.mxu0 0
  %1621 = vmatpush1.bf16.msra.mxu0 %v1613
  %1622 = vmatprep.subr.bf16.mxu0 0
  %1623 = vmatpush1.bf16.msra.mxu0 %v1614
  %1624 = vmatprep.subr.bf16.mxu0 0
  %1625 = vmatpush1.bf16.msra.mxu0 0
  %1626 = vmatprep.subr.bf16.mxu0 0
  %1627 = vmatpush1.bf16.msra.mxu0 0
  %1628 = vmatprep.subr.bf16.mxu0 0
  %1629 = vmatpush1.bf16.msra.mxu0 0
  %1630 = vmatprep.subr.bf16.mxu0 0
  %1631 = vmatpush1.bf16.msra.mxu0 0
  %1632 = vmatprep.subr.bf16.mxu0 0
  %1633 = vmatpush1.bf16.msra.mxu0 0
  %1634 = vmatprep.subr.bf16.mxu0 0
  %1635 = vmatpush1.bf16.msra.mxu0 0
  %1636 = vmatprep.subr.bf16.mxu0 0
  %1637 = vmatpush1.bf16.msra.mxu0 0
  %1638 = vmatprep.subr.bf16.mxu0 0
  %1639 = vmatpush1.bf16.msra.mxu0 0
  %1640 = vmatprep.subr.bf16.mxu0 0
  %1641 = vmatpush1.bf16.msra.mxu0 0
  %1642 = vmatprep.subr.bf16.mxu0 0
  %1643 = vmatpush1.bf16.msra.mxu0 0
  %1644 = vmatprep.subr.bf16.mxu0 0
  %1645 = vmatpush1.bf16.msra.mxu0 0
  %1646 = vmatprep.subr.bf16.mxu0 0
  %1647 = vmatpush1.bf16.msra.mxu0 0
  %1648 = vmatprep.subr.bf16.mxu0 0
  %1649 = vmatpush1.bf16.msra.mxu0 0
  %1650 = vmatprep.subr.bf16.mxu0 0
  %1651 = vmatpush1.bf16.msra.mxu0 0
  %1652 = vmatprep.mubr.bf16.mxu0 0
  %1653 = vmatmul.mubr.bf16.gmra.mrb[0].mxu0 %v1618
  %v1654 = vpop.f32.mrb[0].mxu0
  %v1655 = vadd.f32 %v1603, %v1654
  %v1656 = vpop.f32.mrb[0].mxu0
  %v1657 = vpop.f32.mrb[0].mxu0
  %v1658 = vpop.f32.mrb[0].mxu0
  %1659 = vdwg.mxu0
  %1660 = vst [vmem:[%s20] sm:$0xff] %v1655
  // Predicated region
  $region82: #{transformer_forward.1} parent=0 // pred_check
    _
  $region83: #{transformer_forward.1} parent=0 // pred_check_branch
    %1662 = sbr.rel (0) target = $region85
  $region84: #{transformer_forward.1} parent=0 // pred_region
    _
  $region85: #{transformer_forward.1} parent=0 // pred_fallthru
    _
  // Predicated region
  $region86: #{transformer_forward.1} parent=0 // pred_check
    _
  $region87: #{transformer_forward.1} parent=0 // pred_check_branch
    %1664 = sbr.rel (0) target = $region89
  $region88: #{transformer_forward.1} parent=0 // pred_region
    _
  $region89: #{transformer_forward.1} parent=0 // pred_fallthru
    _

</llo_original>
